<compile_context>
chip_gen: v7x
topology: tpu7x:2x2x1
jax: 0.10.0
libtpu: 0.0.40
codegen_flags: <defaults>
</compile_context>

<pallas_src>
import math

import jax
import jax.numpy as jnp
import numpy as np
from jax import lax
from jax.experimental import pallas as pl
from jax.experimental.pallas import tpu as pltpu


def _round_up(x, m):
    return (x + m - 1) // m * m


def _gelu_exact(x):
    # nn.GELU() default (approximate='none'): 0.5*x*(1+erf(x/sqrt(2))), in f32.
    # TODO(synk): jax.nn.gelu(approximate=True) would move this to the (idle)
    # EUP slot; kept exact for numeric parity with the PyTorch reference.
    return 0.5 * x * (1.0 + lax.erf(x * (1.0 / math.sqrt(2.0))))


# -----------------------------------------------------------------------------
# Single fused Pallas kernel
# -----------------------------------------------------------------------------
def fused_triplet_kernel(x_ref, fp_ref, md_ref, emb_ref, glob_ref, sel_ref,
                         in_w1_ref, in_b1_ref, in_w2_ref, in_b2_ref,
                         fp_w1_ref, fp_b1_ref, fp_w2_ref, fp_b2_ref,
                         md_w1_ref, md_b1_ref, md_w2_ref, md_b2_ref,
                         o_ref, tab_ref):
    f32 = jnp.float32
    fpp = fp_ref.shape[0]          # padded stacked fp/md row count (mult of 8)
    vp = emb_ref.shape[0]          # padded embedding vocab (mult of 8)
    gp = glob_ref.shape[0]         # padded global block (8)

    # --- prologue: fp_proj / md_proj MLPs on the stacked (padded) features ---
    h = _gelu_exact(jnp.dot(fp_ref[...], fp_w1_ref[...],
                            preferred_element_type=f32) + fp_b1_ref[...])
    tab_ref[0:fpp, :] = jnp.dot(h, fp_w2_ref[...],
                                preferred_element_type=f32) + fp_b2_ref[...]

    h = _gelu_exact(jnp.dot(md_ref[...], md_w1_ref[...],
                            preferred_element_type=f32) + md_b1_ref[...])
    tab_ref[fpp:2 * fpp, :] = jnp.dot(h, md_w2_ref[...],
                                      preferred_element_type=f32) + md_b2_ref[...]

    # --- static table blocks: embedding rows + global node row --------------
    tab_ref[2 * fpp:2 * fpp + vp, :] = emb_ref[...].astype(f32)
    tab_ref[2 * fpp + vp:2 * fpp + vp + gp, :] = glob_ref[...].astype(f32)

    # --- in_proj MLP over [node_h | edge_h]: one K = 2*d_g contraction ------
    h = _gelu_exact(jnp.dot(x_ref[...], in_w1_ref[...],
                            preferred_element_type=f32) + in_b1_ref[...])
    y = jnp.dot(h, in_w2_ref[...], preferred_element_type=f32) + in_b2_ref[...]

    # --- one-hot matmul gather (MXU filler) + fused select -------------------
    # Rows with no replacement have an all-zero sel row -> keep y. No separate
    # lane-width-1 mask input needed.
    sel = sel_ref[...].astype(f32)                                  # (n, T)
    repl = jnp.dot(sel, tab_ref[...], preferred_element_type=f32)   # (n, d_g)
    replaced = jnp.sum(sel, axis=-1, keepdims=True)                 # (n, 1)
    o_ref[...] = jnp.where(replaced > 0.5, repl, y).astype(o_ref.dtype)


# -----------------------------------------------------------------------------
# Host-side helpers (tiny glue; everything heavy is inside the single kernel)
# -----------------------------------------------------------------------------
def _build_selection(indicators, ratio, ng, fpp, vp, T):
    """(n, T) one-hot (or zero) bf16 selection matrix into the in-kernel table.

    Table layout: [fp_out(fpp) | md_out(fpp) | embedding(vp) | global(8)].
    """
    v = indicators.astype(jnp.int32)
    vc = jnp.clip(v, 0, 10)

    # Rank of each row within its indicator-value group (single cumsum pass).
    onehot_v = (v[:, None] == jnp.arange(11, dtype=jnp.int32)[None, :]).astype(jnp.int32)
    rank = jnp.take_along_axis(jnp.cumsum(onehot_v, axis=0), vc[:, None], axis=1)[:, 0] - 1
    # TODO(synk): PyTorch masked assignment raises if group counts != ng; we
    # clamp instead (valid inputs are unaffected).
    rank = jnp.clip(rank, 0, ng - 1)

    fp_off, md_off, emb_off, gl_off = 0, fpp, 2 * fpp, 2 * fpp + vp
    base = jnp.array([0,                                   # 0 : unused
                      fp_off + 0 * ng,                     # 1 : fp_proj(fp_1)
                      md_off + 0 * ng,                     # 2 : md_proj(md_1)
                      emb_off,                             # 3 : emb[ratio[:,0]]
                      fp_off + 1 * ng,                     # 4 : fp_proj(fp_2)
                      md_off + 1 * ng,                     # 5 : md_proj(md_2)
                      emb_off,                             # 6 : emb[ratio[:,1]]
                      fp_off + 2 * ng,                     # 7 : fp_proj(fp_3)
                      md_off + 2 * ng,                     # 8 : md_proj(md_3)
                      emb_off,                             # 9 : emb[ratio[:,2]]
                      gl_off], jnp.int32)                  # 10: global_node_emb

    ratio_i = jnp.clip(ratio.astype(jnp.int32), 0, vp - 1)         # (ng, 3)
    ratio_rows = ratio_i[rank]                                      # (n, 3)
    emb_col = jnp.where(v == 3, 0, jnp.where(v == 6, 1, 2))
    emb_add = jnp.take_along_axis(ratio_rows, emb_col[:, None], axis=1)[:, 0]
    is_emb = (v == 3) | (v == 6) | (v == 9)

    add = jnp.where(v == 10, 0, jnp.where(is_emb, emb_add, rank))
    idx = base[vc] + add
    valid = (v >= 1) & (v <= 10)
    sel = ((idx[:, None] == jnp.arange(T, dtype=jnp.int32)[None, :])
           & valid[:, None])
    return sel.astype(jnp.bfloat16)


def prepare_params(p):
    """bf16-cast weights + prepack padded embedding/global table blocks."""
    bf = jnp.bfloat16
    kp = {k: p[k].astype(bf)
          for k in ("in_w1", "in_b1", "in_w2", "in_b2",
                    "fp_w1", "fp_b1", "fp_w2", "fp_b2",
                    "md_w1", "md_b1", "md_w2", "md_b2")}
    vocab, d_g = p["emb"].shape
    vp = _round_up(vocab, 8)
    kp["emb_pad"] = jnp.zeros((vp, d_g), bf).at[:vocab].set(p["emb"].astype(bf))
    kp["glob_pad"] = jnp.zeros((8, d_g), bf).at[0:1].set(
        p["global_node_emb"].astype(bf))
    return kp


# -----------------------------------------------------------------------------
# TripletEmbeddingCopoly forward (single pallas_call)
# -----------------------------------------------------------------------------
# TODO(synk): if n_rows grows beyond a few thousand, tile the row axis (e.g.
# 2048 rows) and mark it "parallel" (dual-TC sharding on v7x) while keeping the
# weight/table BlockSpecs' index_map constant so they stay VMEM-resident.
def triplet_embedding_copoly(kp, node_h, edge_h, fp_1, md_1, fp_2, md_2,
                             fp_3, md_3, ratio, indicators):
    bf = jnp.bfloat16
    n, d_g = node_h.shape
    ng, d_fp = fp_1.shape
    d_md = md_1.shape[1]

    fpp = max(8, _round_up(3 * ng, 8))
    vp = kp["emb_pad"].shape[0]
    gp = kp["glob_pad"].shape[0]
    T = 2 * fpp + vp + gp

    # bf16 activations (half the DMA bytes); single [node|edge] concat so the
    # in_proj layer-1 dot is one K=2*d_g contraction.
    x = jnp.concatenate([node_h, edge_h], axis=-1).astype(bf)          # (n, 2*d_g)
    fp_x = jnp.pad(jnp.concatenate([fp_1, fp_2, fp_3], 0).astype(bf),
                   ((0, fpp - 3 * ng), (0, 0)))                        # (fpp, d_fp)
    md_x = jnp.pad(jnp.concatenate([md_1, md_2, md_3], 0).astype(bf),
                   ((0, fpp - 3 * ng), (0, 0)))                        # (fpp, d_md)
    sel = _build_selection(indicators, ratio, ng, fpp, vp, T)          # (n, T)

    inputs = (x, fp_x, md_x, kp["emb_pad"], kp["glob_pad"], sel,
              kp["in_w1"], kp["in_b1"], kp["in_w2"], kp["in_b2"],
              kp["fp_w1"], kp["fp_b1"], kp["fp_w2"], kp["fp_b2"],
              kp["md_w1"], kp["md_b1"], kp["md_w2"], kp["md_b2"])

    def spec(shape):
        return pl.BlockSpec(shape, lambda i: (0, 0))

    flops = 2 * (fpp * (d_fp * d_g + d_g * d_g)
                 + fpp * (d_md * d_g + d_g * d_g)
                 + n * (2 * d_g * d_g + d_g * d_g)
                 + n * T * d_g)
    bytes_accessed = (sum(int(np.prod(a.shape)) * a.dtype.itemsize for a in inputs)
                      + 4 * n * d_g)

    return pl.pallas_call(
        fused_triplet_kernel,
        out_shape=jax.ShapeDtypeStruct((n, d_g), jnp.float32),
        grid_spec=pltpu.PrefetchScalarGridSpec(
            num_scalar_prefetch=0,
            grid=(1,),
            in_specs=[spec(a.shape) for a in inputs],
            out_specs=spec((n, d_g)),
            scratch_shapes=[pltpu.VMEM((T, d_g), jnp.float32)],
        ),
        compiler_params=pltpu.CompilerParams(dimension_semantics=("arbitrary",)),
        cost_estimate=pl.CostEstimate(flops=flops,
                                      transcendentals=(2 * fpp + n) * d_g,
                                      bytes_accessed=bytes_accessed),
    )(*inputs)


# -----------------------------------------------------------------------------
# Parameter construction (deterministic, synthetic, f32 ground truth)
# -----------------------------------------------------------------------------
def make_params(key, d_g, d_fp, d_md, vocab=101):
    ks = jax.random.split(key, 14)

    def linear(kw, kb, d_in, d_out):
        scale = 1.0 / math.sqrt(d_in)
        w = jax.random.uniform(kw, (d_in, d_out), jnp.float32, -scale, scale)
        b = jax.random.uniform(kb, (1, d_out), jnp.float32, -scale, scale)
        return w, b

    p = {}
    p["in_w1"], p["in_b1"] = linear(ks[0], ks[1], 2 * d_g, d_g)
    p["in_w2"], p["in_b2"] = linear(ks[2], ks[3], d_g, d_g)
    p["fp_w1"], p["fp_b1"] = linear(ks[4], ks[5], d_fp, d_g)
    p["fp_w2"], p["fp_b2"] = linear(ks[6], ks[7], d_g, d_g)
    p["md_w1"], p["md_b1"] = linear(ks[8], ks[9], d_md, d_g)
    p["md_w2"], p["md_b2"] = linear(ks[10], ks[11], d_g, d_g)
    p["emb"] = jax.random.normal(ks[12], (vocab, d_g), jnp.float32)
    p["global_node_emb"] = jax.random.normal(ks[13], (1, d_g), jnp.float32)
    return p


# -----------------------------------------------------------------------------
# Pure-JAX reference (mirrors the PyTorch forward, f32 HIGHEST precision)
# -----------------------------------------------------------------------------
def _ref_mlp2(x, w1, b1, w2, b2):
    hp = lax.Precision.HIGHEST
    h = _gelu_exact(jnp.dot(x, w1, precision=hp) + b1)
    return jnp.dot(h, w2, precision=hp) + b2


def reference_forward(p, node_h, edge_h, fp_1, md_1, fp_2, md_2,
                      fp_3, md_3, ratio, indicators):
    cat = jnp.concatenate([node_h, edge_h], axis=-1)
    out = _ref_mlp2(cat, p["in_w1"], p["in_b1"], p["in_w2"], p["in_b2"])
    ratio_i = ratio.astype(jnp.int32)
    sources = {
        1: _ref_mlp2(fp_1, p["fp_w1"], p["fp_b1"], p["fp_w2"], p["fp_b2"]),
        2: _ref_mlp2(md_1, p["md_w1"], p["md_b1"], p["md_w2"], p["md_b2"]),
        3: p["emb"][ratio_i[:, 0]],
        4: _ref_mlp2(fp_2, p["fp_w1"], p["fp_b1"], p["fp_w2"], p["fp_b2"]),
        5: _ref_mlp2(md_2, p["md_w1"], p["md_b1"], p["md_w2"], p["md_b2"]),
        6: p["emb"][ratio_i[:, 1]],
        7: _ref_mlp2(fp_3, p["fp_w1"], p["fp_b1"], p["fp_w2"], p["fp_b2"]),
        8: _ref_mlp2(md_3, p["md_w1"], p["md_b1"], p["md_w2"], p["md_b2"]),
        9: p["emb"][ratio_i[:, 2]],
    }
    for val, src in sources.items():
        m = indicators == val
        rnk = jnp.clip(jnp.cumsum(m.astype(jnp.int32)) - 1, 0, src.shape[0] - 1)
        out = jnp.where(m[:, None], src[rnk], out)
    out = jnp.where((indicators == 10)[:, None],
                    p["global_node_emb"][0][None, :], out)
    return out


# -----------------------------------------------------------------------------
if __name__ == "__main__":
    # Lane-dense demo dims (d_g = 128, table rows T = 128).
    d_g, d_fp, d_md = 128, 256, 128
    n_nodes, n_graphs = 64, 2

    key = jax.random.PRNGKey(0)
    kp_key, k1, k2, k3, k4, k5, k6, k7, k8 = jax.random.split(key, 9)

    params = make_params(kp_key, d_g, d_fp, d_md)
    kernel_params = prepare_params(params)   # bf16 + padded tables, done once

    node_h = jax.random.normal(k1, (n_nodes, d_g), jnp.float32)
    edge_h = jax.random.normal(k2, (n_nodes, d_g), jnp.float32)
    fp_1 = jax.random.normal(k3, (n_graphs, d_fp), jnp.float32)
    fp_2 = jax.random.normal(k4, (n_graphs, d_fp), jnp.float32)
    fp_3 = jax.random.normal(k5, (n_graphs, d_fp), jnp.float32)
    md_1 = jax.random.normal(k6, (n_graphs, d_md), jnp.float32)
    md_2 = jax.random.normal(k7, (n_graphs, d_md), jnp.float32)
    md_3 = jax.random.normal(k8, (n_graphs, d_md), jnp.float32)
    ratio = jnp.array([[10.0, 20.0, 70.0], [30.0, 30.0, 40.0]], jnp.float32)

    # Each special value 1..10 appears exactly n_graphs times (as the PyTorch
    # masked assignment requires); remaining rows are ordinary triplets (0).
    ind_list = []
    for val in range(1, 11):
        ind_list += [val] * n_graphs
    ind_list += [0] * (n_nodes - len(ind_list))
    indicators = jnp.array(ind_list, jnp.int32)

    fwd = jax.jit(triplet_embedding_copoly)
    out = fwd(kernel_params, node_h, edge_h, fp_1, md_1, fp_2, md_2,
              fp_3, md_3, ratio, indicators)
    out = jax.block_until_ready(out)

    ref = reference_forward(params, node_h, edge_h, fp_1, md_1, fp_2, md_2,
                            fp_3, md_3, ratio, indicators)
    ref = jax.block_until_ready(ref)

    assert out.shape == (n_nodes, d_g)
    np.testing.assert_allclose(np.asarray(out), np.asarray(ref),
                               rtol=2e-2, atol=2e-2)
    print("KERNEL_OK")
</pallas_src>

<mosaic_0001>
module attributes {stable_mosaic.version = 11 : i64} {
  func.func @fused_triplet_kernel(%arg0: i32, %arg1: memref<64x256xbf16, #tpu.memory_space<vmem>>, %arg2: memref<8x256xbf16, #tpu.memory_space<vmem>>, %arg3: memref<8x128xbf16, #tpu.memory_space<vmem>>, %arg4: memref<104x128xbf16, #tpu.memory_space<vmem>>, %arg5: memref<8x128xbf16, #tpu.memory_space<vmem>>, %arg6: memref<64x128xbf16, #tpu.memory_space<vmem>>, %arg7: memref<256x128xbf16, #tpu.memory_space<vmem>>, %arg8: memref<1x128xbf16, #tpu.memory_space<vmem>>, %arg9: memref<128x128xbf16, #tpu.memory_space<vmem>>, %arg10: memref<1x128xbf16, #tpu.memory_space<vmem>>, %arg11: memref<256x128xbf16, #tpu.memory_space<vmem>>, %arg12: memref<1x128xbf16, #tpu.memory_space<vmem>>, %arg13: memref<128x128xbf16, #tpu.memory_space<vmem>>, %arg14: memref<1x128xbf16, #tpu.memory_space<vmem>>, %arg15: memref<128x128xbf16, #tpu.memory_space<vmem>>, %arg16: memref<1x128xbf16, #tpu.memory_space<vmem>>, %arg17: memref<128x128xbf16, #tpu.memory_space<vmem>>, %arg18: memref<1x128xbf16, #tpu.memory_space<vmem>>, %arg19: memref<64x128xf32, #tpu.memory_space<vmem>>, %arg20: memref<128x128xf32, #tpu.memory_space<vmem>>) attributes {dimension_semantics = [#tpu.dimension_semantics<arbitrary>], iteration_bounds = array<i64: 1>, scalar_prefetch = 0 : i64, scratch_operands = 1 : i64, tpu.core_type = #tpu.core_type<tc>, window_params = [{pipeline_mode = #tpu.pipeline_mode<synchronous>, transform_indices = @transform_0, window_bounds = array<i64: 64, 256>}, {pipeline_mode = #tpu.pipeline_mode<synchronous>, transform_indices = @transform_1, window_bounds = array<i64: 8, 256>}, {pipeline_mode = #tpu.pipeline_mode<synchronous>, transform_indices = @transform_2, window_bounds = array<i64: 8, 128>}, {pipeline_mode = #tpu.pipeline_mode<synchronous>, transform_indices = @transform_3, window_bounds = array<i64: 104, 128>}, {pipeline_mode = #tpu.pipeline_mode<synchronous>, transform_indices = @transform_4, window_bounds = array<i64: 8, 128>}, {pipeline_mode = #tpu.pipeline_mode<synchronous>, transform_indices = @transform_5, window_bounds = array<i64: 64, 128>}, {pipeline_mode = #tpu.pipeline_mode<synchronous>, transform_indices = @transform_6, window_bounds = array<i64: 256, 128>}, {pipeline_mode = #tpu.pipeline_mode<synchronous>, transform_indices = @transform_7, window_bounds = array<i64: 1, 128>}, {pipeline_mode = #tpu.pipeline_mode<synchronous>, transform_indices = @transform_8, window_bounds = array<i64: 128, 128>}, {pipeline_mode = #tpu.pipeline_mode<synchronous>, transform_indices = @transform_9, window_bounds = array<i64: 1, 128>}, {pipeline_mode = #tpu.pipeline_mode<synchronous>, transform_indices = @transform_10, window_bounds = array<i64: 256, 128>}, {pipeline_mode = #tpu.pipeline_mode<synchronous>, transform_indices = @transform_11, window_bounds = array<i64: 1, 128>}, {pipeline_mode = #tpu.pipeline_mode<synchronous>, transform_indices = @transform_12, window_bounds = array<i64: 128, 128>}, {pipeline_mode = #tpu.pipeline_mode<synchronous>, transform_indices = @transform_13, window_bounds = array<i64: 1, 128>}, {pipeline_mode = #tpu.pipeline_mode<synchronous>, transform_indices = @transform_14, window_bounds = array<i64: 128, 128>}, {pipeline_mode = #tpu.pipeline_mode<synchronous>, transform_indices = @transform_15, window_bounds = array<i64: 1, 128>}, {pipeline_mode = #tpu.pipeline_mode<synchronous>, transform_indices = @transform_16, window_bounds = array<i64: 128, 128>}, {pipeline_mode = #tpu.pipeline_mode<synchronous>, transform_indices = @transform_17, window_bounds = array<i64: 1, 128>}, {pipeline_mode = #tpu.pipeline_mode<synchronous>, transform_indices = @transform_18, window_bounds = array<i64: 64, 128>}]} {
    %c0 = arith.constant 0 : index
    %c0_0 = arith.constant 0 : index
    %0 = vector.load %arg2[%c0, %c0_0] : memref<8x256xbf16, #tpu.memory_space<vmem>>, vector<8x256xbf16>
    %c0_1 = arith.constant 0 : index
    %c0_2 = arith.constant 0 : index
    %1 = vector.load %arg11[%c0_1, %c0_2] : memref<256x128xbf16, #tpu.memory_space<vmem>>, vector<256x128xbf16>
    %cst = arith.constant dense<0.000000e+00> : vector<8x128xf32>
    %2 = tpu.matmul %0, %1, %cst {dimension_numbers = #tpu.dot_dimension_numbers<[1], [0], [0], [1], [0, 0, 1, 1], [], []>} : vector<8x256xbf16>, vector<256x128xbf16>, vector<8x128xf32> -> vector<8x128xf32>
    %c0_3 = arith.constant 0 : index
    %c0_4 = arith.constant 0 : index
    %3 = vector.load %arg12[%c0_3, %c0_4] : memref<1x128xbf16, #tpu.memory_space<vmem>>, vector<1x128xbf16>
    %4 = arith.extf %3 : vector<1x128xbf16> to vector<1x128xf32>
    %5 = vector.broadcast %4 : vector<1x128xf32> to vector<8x128xf32>
    %6 = arith.addf %2, %5 : vector<8x128xf32>
    %cst_5 = arith.constant 5.000000e-01 : f32
    %7 = vector.broadcast %cst_5 : f32 to vector<8x128xf32>
    %8 = arith.mulf %7, %6 : vector<8x128xf32>
    %cst_6 = arith.constant 0.707106769 : f32
    %9 = vector.broadcast %cst_6 : f32 to vector<8x128xf32>
    %10 = arith.mulf %6, %9 : vector<8x128xf32>
    %11 = math.erf %10 : vector<8x128xf32>
    %cst_7 = arith.constant 1.000000e+00 : f32
    %12 = vector.broadcast %cst_7 : f32 to vector<8x128xf32>
    %13 = arith.addf %12, %11 : vector<8x128xf32>
    %14 = arith.mulf %8, %13 : vector<8x128xf32>
    %c0_8 = arith.constant 0 : index
    %c0_9 = arith.constant 0 : index
    %15 = vector.load %arg13[%c0_8, %c0_9] : memref<128x128xbf16, #tpu.memory_space<vmem>>, vector<128x128xbf16>
    %cst_10 = arith.constant dense<0.000000e+00> : vector<8x128xf32>
    %16 = tpu.matmul %14, %15, %cst_10 {dimension_numbers = #tpu.dot_dimension_numbers<[1], [0], [0], [1], [0, 0, 1, 1], [], []>} : vector<8x128xf32>, vector<128x128xbf16>, vector<8x128xf32> -> vector<8x128xf32>
    %c0_11 = arith.constant 0 : index
    %c0_12 = arith.constant 0 : index
    %17 = vector.load %arg14[%c0_11, %c0_12] : memref<1x128xbf16, #tpu.memory_space<vmem>>, vector<1x128xbf16>
    %18 = arith.extf %17 : vector<1x128xbf16> to vector<1x128xf32>
    %19 = vector.broadcast %18 : vector<1x128xf32> to vector<8x128xf32>
    %20 = arith.addf %16, %19 : vector<8x128xf32>
    %c0_13 = arith.constant 0 : index
    %c0_14 = arith.constant 0 : index
    %21 = vector.load %arg20[%c0_13, %c0_14] : memref<128x128xf32, #tpu.memory_space<vmem>>, vector<8x128xf32>
    tpu.vector_store %arg20[%c0_13, %c0_14], %20 {strides = array<i32>} : memref<128x128xf32, #tpu.memory_space<vmem>>, vector<8x128xf32>,
    %c0_15 = arith.constant 0 : index
    %c0_16 = arith.constant 0 : index
    %22 = vector.load %arg3[%c0_15, %c0_16] : memref<8x128xbf16, #tpu.memory_space<vmem>>, vector<8x128xbf16>
    %c0_17 = arith.constant 0 : index
    %c0_18 = arith.constant 0 : index
    %23 = vector.load %arg15[%c0_17, %c0_18] : memref<128x128xbf16, #tpu.memory_space<vmem>>, vector<128x128xbf16>
    %cst_19 = arith.constant dense<0.000000e+00> : vector<8x128xf32>
    %24 = tpu.matmul %22, %23, %cst_19 {dimension_numbers = #tpu.dot_dimension_numbers<[1], [0], [0], [1], [0, 0, 1, 1], [], []>} : vector<8x128xbf16>, vector<128x128xbf16>, vector<8x128xf32> -> vector<8x128xf32>
    %c0_20 = arith.constant 0 : index
    %c0_21 = arith.constant 0 : index
    %25 = vector.load %arg16[%c0_20, %c0_21] : memref<1x128xbf16, #tpu.memory_space<vmem>>, vector<1x128xbf16>
    %26 = arith.extf %25 : vector<1x128xbf16> to vector<1x128xf32>
    %27 = vector.broadcast %26 : vector<1x128xf32> to vector<8x128xf32>
    %28 = arith.addf %24, %27 : vector<8x128xf32>
    %cst_22 = arith.constant 5.000000e-01 : f32
    %29 = vector.broadcast %cst_22 : f32 to vector<8x128xf32>
    %30 = arith.mulf %29, %28 : vector<8x128xf32>
    %cst_23 = arith.constant 0.707106769 : f32
    %31 = vector.broadcast %cst_23 : f32 to vector<8x128xf32>
    %32 = arith.mulf %28, %31 : vector<8x128xf32>
    %33 = math.erf %32 : vector<8x128xf32>
    %cst_24 = arith.constant 1.000000e+00 : f32
    %34 = vector.broadcast %cst_24 : f32 to vector<8x128xf32>
    %35 = arith.addf %34, %33 : vector<8x128xf32>
    %36 = arith.mulf %30, %35 : vector<8x128xf32>
    %c0_25 = arith.constant 0 : index
    %c0_26 = arith.constant 0 : index
    %37 = vector.load %arg17[%c0_25, %c0_26] : memref<128x128xbf16, #tpu.memory_space<vmem>>, vector<128x128xbf16>
    %cst_27 = arith.constant dense<0.000000e+00> : vector<8x128xf32>
    %38 = tpu.matmul %36, %37, %cst_27 {dimension_numbers = #tpu.dot_dimension_numbers<[1], [0], [0], [1], [0, 0, 1, 1], [], []>} : vector<8x128xf32>, vector<128x128xbf16>, vector<8x128xf32> -> vector<8x128xf32>
    %c0_28 = arith.constant 0 : index
    %c0_29 = arith.constant 0 : index
    %39 = vector.load %arg18[%c0_28, %c0_29] : memref<1x128xbf16, #tpu.memory_space<vmem>>, vector<1x128xbf16>
    %40 = arith.extf %39 : vector<1x128xbf16> to vector<1x128xf32>
    %41 = vector.broadcast %40 : vector<1x128xf32> to vector<8x128xf32>
    %42 = arith.addf %38, %41 : vector<8x128xf32>
    %c8 = arith.constant 8 : index
    %c0_30 = arith.constant 0 : index
    %43 = vector.load %arg20[%c8, %c0_30] : memref<128x128xf32, #tpu.memory_space<vmem>>, vector<8x128xf32>
    tpu.vector_store %arg20[%c8, %c0_30], %42 {strides = array<i32>} : memref<128x128xf32, #tpu.memory_space<vmem>>, vector<8x128xf32>,
    %c0_31 = arith.constant 0 : index
    %c0_32 = arith.constant 0 : index
    %44 = vector.load %arg4[%c0_31, %c0_32] : memref<104x128xbf16, #tpu.memory_space<vmem>>, vector<104x128xbf16>
    %45 = arith.extf %44 : vector<104x128xbf16> to vector<104x128xf32>
    %c16 = arith.constant 16 : index
    %c0_33 = arith.constant 0 : index
    %46 = vector.load %arg20[%c16, %c0_33] : memref<128x128xf32, #tpu.memory_space<vmem>>, vector<104x128xf32>
    tpu.vector_store %arg20[%c16, %c0_33], %45 {strides = array<i32>} : memref<128x128xf32, #tpu.memory_space<vmem>>, vector<104x128xf32>,
    %c0_34 = arith.constant 0 : index
    %c0_35 = arith.constant 0 : index
    %47 = vector.load %arg5[%c0_34, %c0_35] : memref<8x128xbf16, #tpu.memory_space<vmem>>, vector<8x128xbf16>
    %48 = arith.extf %47 : vector<8x128xbf16> to vector<8x128xf32>
    %c120 = arith.constant 120 : index
    %c0_36 = arith.constant 0 : index
    %49 = vector.load %arg20[%c120, %c0_36] : memref<128x128xf32, #tpu.memory_space<vmem>>, vector<8x128xf32>
    tpu.vector_store %arg20[%c120, %c0_36], %48 {strides = array<i32>} : memref<128x128xf32, #tpu.memory_space<vmem>>, vector<8x128xf32>,
    %c0_37 = arith.constant 0 : index
    %c0_38 = arith.constant 0 : index
    %50 = vector.load %arg1[%c0_37, %c0_38] : memref<64x256xbf16, #tpu.memory_space<vmem>>, vector<64x256xbf16>
    %c0_39 = arith.constant 0 : index
    %c0_40 = arith.constant 0 : index
    %51 = vector.load %arg7[%c0_39, %c0_40] : memref<256x128xbf16, #tpu.memory_space<vmem>>, vector<256x128xbf16>
    %cst_41 = arith.constant dense<0.000000e+00> : vector<64x128xf32>
    %52 = tpu.matmul %50, %51, %cst_41 {dimension_numbers = #tpu.dot_dimension_numbers<[1], [0], [0], [1], [0, 0, 1, 1], [], []>} : vector<64x256xbf16>, vector<256x128xbf16>, vector<64x128xf32> -> vector<64x128xf32>
    %c0_42 = arith.constant 0 : index
    %c0_43 = arith.constant 0 : index
    %53 = vector.load %arg8[%c0_42, %c0_43] : memref<1x128xbf16, #tpu.memory_space<vmem>>, vector<1x128xbf16>
    %54 = arith.extf %53 : vector<1x128xbf16> to vector<1x128xf32>
    %55 = vector.broadcast %54 : vector<1x128xf32> to vector<64x128xf32>
    %56 = arith.addf %52, %55 : vector<64x128xf32>
    %cst_44 = arith.constant 5.000000e-01 : f32
    %57 = vector.broadcast %cst_44 : f32 to vector<64x128xf32>
    %58 = arith.mulf %57, %56 : vector<64x128xf32>
    %cst_45 = arith.constant 0.707106769 : f32
    %59 = vector.broadcast %cst_45 : f32 to vector<64x128xf32>
    %60 = arith.mulf %56, %59 : vector<64x128xf32>
    %61 = math.erf %60 : vector<64x128xf32>
    %cst_46 = arith.constant 1.000000e+00 : f32
    %62 = vector.broadcast %cst_46 : f32 to vector<64x128xf32>
    %63 = arith.addf %62, %61 : vector<64x128xf32>
    %64 = arith.mulf %58, %63 : vector<64x128xf32>
    %c0_47 = arith.constant 0 : index
    %c0_48 = arith.constant 0 : index
    %65 = vector.load %arg9[%c0_47, %c0_48] : memref<128x128xbf16, #tpu.memory_space<vmem>>, vector<128x128xbf16>
    %cst_49 = arith.constant dense<0.000000e+00> : vector<64x128xf32>
    %66 = tpu.matmul %64, %65, %cst_49 {dimension_numbers = #tpu.dot_dimension_numbers<[1], [0], [0], [1], [0, 0, 1, 1], [], []>} : vector<64x128xf32>, vector<128x128xbf16>, vector<64x128xf32> -> vector<64x128xf32>
    %c0_50 = arith.constant 0 : index
    %c0_51 = arith.constant 0 : index
    %67 = vector.load %arg10[%c0_50, %c0_51] : memref<1x128xbf16, #tpu.memory_space<vmem>>, vector<1x128xbf16>
    %68 = arith.extf %67 : vector<1x128xbf16> to vector<1x128xf32>
    %69 = vector.broadcast %68 : vector<1x128xf32> to vector<64x128xf32>
    %70 = arith.addf %66, %69 : vector<64x128xf32>
    %c0_52 = arith.constant 0 : index
    %c0_53 = arith.constant 0 : index
    %71 = vector.load %arg6[%c0_52, %c0_53] : memref<64x128xbf16, #tpu.memory_space<vmem>>, vector<64x128xbf16>
    %72 = arith.extf %71 : vector<64x128xbf16> to vector<64x128xf32>
    %c0_54 = arith.constant 0 : index
    %c0_55 = arith.constant 0 : index
    %73 = vector.load %arg20[%c0_54, %c0_55] : memref<128x128xf32, #tpu.memory_space<vmem>>, vector<128x128xf32>
    %cst_56 = arith.constant dense<0.000000e+00> : vector<64x128xf32>
    %74 = tpu.matmul %72, %73, %cst_56 {dimension_numbers = #tpu.dot_dimension_numbers<[1], [0], [0], [1], [0, 0, 1, 1], [], []>} : vector<64x128xf32>, vector<128x128xf32>, vector<64x128xf32> -> vector<64x128xf32>
    %cst_57 = arith.constant dense<0.000000e+00> : vector<64xf32>
    %75 = vector.multi_reduction <add>, %72, %cst_57 [1] : vector<64x128xf32> to vector<64xf32>
    %76 = vector.shape_cast %75 : vector<64xf32> to vector<64x1xf32>
    %cst_58 = arith.constant 5.000000e-01 : f32
    %77 = vector.broadcast %cst_58 : f32 to vector<64x1xf32>
    %78 = arith.cmpf ogt, %76, %77 : vector<64x1xf32>
    %79 = vector.shape_cast %78 : vector<64x1xi1> to vector<64x1xi1>
    %80 = vector.broadcast %79 : vector<64x1xi1> to vector<64x128xi1>
    %81 = arith.select %80, %74, %70 : vector<64x128xi1>, vector<64x128xf32>
    %c0_59 = arith.constant 0 : index
    %c0_60 = arith.constant 0 : index
    %82 = vector.load %arg19[%c0_59, %c0_60] : memref<64x128xf32, #tpu.memory_space<vmem>>, vector<64x128xf32>
    tpu.vector_store %arg19[%c0_59, %c0_60], %81 {strides = array<i32>} : memref<64x128xf32, #tpu.memory_space<vmem>>, vector<64x128xf32>,
    return
  }
  func.func @transform_0(%arg0: i32) -> (i32, i32) {
    %c0_i32 = arith.constant 0 : i32
    %c0_i32_0 = arith.constant 0 : i32
    %c0_i32_1 = arith.constant 0 : i32
    return %c0_i32, %c0_i32_0 : i32, i32
  }
  func.func @transform_1(%arg0: i32) -> (i32, i32) {
    %c0_i32 = arith.constant 0 : i32
    %c0_i32_0 = arith.constant 0 : i32
    %c0_i32_1 = arith.constant 0 : i32
    return %c0_i32, %c0_i32_0 : i32, i32
  }
  func.func @transform_2(%arg0: i32) -> (i32, i32) {
    %c0_i32 = arith.constant 0 : i32
    %c0_i32_0 = arith.constant 0 : i32
    %c0_i32_1 = arith.constant 0 : i32
    return %c0_i32, %c0_i32_0 : i32, i32
  }
  func.func @transform_3(%arg0: i32) -> (i32, i32) {
    %c0_i32 = arith.constant 0 : i32
    %c0_i32_0 = arith.constant 0 : i32
    %c0_i32_1 = arith.constant 0 : i32
    return %c0_i32, %c0_i32_0 : i32, i32
  }
  func.func @transform_4(%arg0: i32) -> (i32, i32) {
    %c0_i32 = arith.constant 0 : i32
    %c0_i32_0 = arith.constant 0 : i32
    %c0_i32_1 = arith.constant 0 : i32
    return %c0_i32, %c0_i32_0 : i32, i32
  }
  func.func @transform_5(%arg0: i32) -> (i32, i32) {
    %c0_i32 = arith.constant 0 : i32
    %c0_i32_0 = arith.constant 0 : i32
    %c0_i32_1 = arith.constant 0 : i32
    return %c0_i32, %c0_i32_0 : i32, i32
  }
  func.func @transform_6(%arg0: i32) -> (i32, i32) {
    %c0_i32 = arith.constant 0 : i32
    %c0_i32_0 = arith.constant 0 : i32
    %c0_i32_1 = arith.constant 0 : i32
    return %c0_i32, %c0_i32_0 : i32, i32
  }
  func.func @transform_7(%arg0: i32) -> (i32, i32) {
    %c0_i32 = arith.constant 0 : i32
    %c0_i32_0 = arith.constant 0 : i32
    %c0_i32_1 = arith.constant 0 : i32
    return %c0_i32, %c0_i32_0 : i32, i32
  }
  func.func @transform_8(%arg0: i32) -> (i32, i32) {
    %c0_i32 = arith.constant 0 : i32
    %c0_i32_0 = arith.constant 0 : i32
    %c0_i32_1 = arith.constant 0 : i32
    return %c0_i32, %c0_i32_0 : i32, i32
  }
  func.func @transform_9(%arg0: i32) -> (i32, i32) {
    %c0_i32 = arith.constant 0 : i32
    %c0_i32_0 = arith.constant 0 : i32
    %c0_i32_1 = arith.constant 0 : i32
    return %c0_i32, %c0_i32_0 : i32, i32
  }
  func.func @transform_10(%arg0: i32) -> (i32, i32) {
    %c0_i32 = arith.constant 0 : i32
    %c0_i32_0 = arith.constant 0 : i32
    %c0_i32_1 = arith.constant 0 : i32
    return %c0_i32, %c0_i32_0 : i32, i32
  }
  func.func @transform_11(%arg0: i32) -> (i32, i32) {
    %c0_i32 = arith.constant 0 : i32
    %c0_i32_0 = arith.constant 0 : i32
    %c0_i32_1 = arith.constant 0 : i32
    return %c0_i32, %c0_i32_0 : i32, i32
  }
  func.func @transform_12(%arg0: i32) -> (i32, i32) {
    %c0_i32 = arith.constant 0 : i32
    %c0_i32_0 = arith.constant 0 : i32
    %c0_i32_1 = arith.constant 0 : i32
    return %c0_i32, %c0_i32_0 : i32, i32
  }
  func.func @transform_13(%arg0: i32) -> (i32, i32) {
    %c0_i32 = arith.constant 0 : i32
    %c0_i32_0 = arith.constant 0 : i32
    %c0_i32_1 = arith.constant 0 : i32
    return %c0_i32, %c0_i32_0 : i32, i32
  }
  func.func @transform_14(%arg0: i32) -> (i32, i32) {
    %c0_i32 = arith.constant 0 : i32
    %c0_i32_0 = arith.constant 0 : i32
    %c0_i32_1 = arith.constant 0 : i32
    return %c0_i32, %c0_i32_0 : i32, i32
  }
  func.func @transform_15(%arg0: i32) -> (i32, i32) {
    %c0_i32 = arith.constant 0 : i32
    %c0_i32_0 = arith.constant 0 : i32
    %c0_i32_1 = arith.constant 0 : i32
    return %c0_i32, %c0_i32_0 : i32, i32
  }
  func.func @transform_16(%arg0: i32) -> (i32, i32) {
    %c0_i32 = arith.constant 0 : i32
    %c0_i32_0 = arith.constant 0 : i32
    %c0_i32_1 = arith.constant 0 : i32
    return %c0_i32, %c0_i32_0 : i32, i32
  }
  func.func @transform_17(%arg0: i32) -> (i32, i32) {
    %c0_i32 = arith.constant 0 : i32
    %c0_i32_0 = arith.constant 0 : i32
    %c0_i32_1 = arith.constant 0 : i32
    return %c0_i32, %c0_i32_0 : i32, i32
  }
  func.func @transform_18(%arg0: i32) -> (i32, i32) {
    %c0_i32 = arith.constant 0 : i32
    %c0_i32_0 = arith.constant 0 : i32
    %c0_i32_1 = arith.constant 0 : i32
    return %c0_i32, %c0_i32_0 : i32, i32
  }
}

</mosaic_0001>

<llo_original>
// kernel: triplet_embedding_copoly.1
$region0: #{triplet_embedding_copoly.1}
  #allocation0 [shape = 'u32[]', space=smem, size = 0x4, offset = 0x4, fixed_abs, tag = 'smem constant byte address 0x4 - core index']
  #allocation1 [shape = 'u32[144,128]{1,0:T(1,128)}', space=vmem, size = 0x12000, scoped, tag = 'internal scratch']
  #allocation2 [shape = 'f32[128,128]{1,0:T(8,128)}', space=vmem, size = 0x10000, scoped, tag = 'scratch operand']
  %s0 = inlined_call_operand.vmem [shape: bf16[64,256], index: 0, kind: input, shape index: {}]
  %s1 = inlined_call_operand.vmem [shape: bf16[8,256], index: 1, kind: input, shape index: {}]
  %s2 = inlined_call_operand.vmem [shape: bf16[8,128], index: 2, kind: input, shape index: {}]
  %s3 = inlined_call_operand.vmem [shape: bf16[104,128], index: 3, kind: input, shape index: {}]
  %s4 = inlined_call_operand.vmem [shape: bf16[8,128], index: 4, kind: input, shape index: {}]
  %s5 = inlined_call_operand.vmem [shape: bf16[64,128], index: 5, kind: input, shape index: {}]
  %s6 = inlined_call_operand.vmem [shape: bf16[256,128], index: 6, kind: input, shape index: {}]
  %s7 = inlined_call_operand.vmem [shape: bf16[1,128], index: 7, kind: input, shape index: {}]
  %s8 = inlined_call_operand.vmem [shape: bf16[128,128], index: 8, kind: input, shape index: {}]
  %s9 = inlined_call_operand.vmem [shape: bf16[1,128], index: 9, kind: input, shape index: {}]
  %s10 = inlined_call_operand.vmem [shape: bf16[256,128], index: 10, kind: input, shape index: {}]
  %s11 = inlined_call_operand.vmem [shape: bf16[1,128], index: 11, kind: input, shape index: {}]
  %s12 = inlined_call_operand.vmem [shape: bf16[128,128], index: 12, kind: input, shape index: {}]
  %s13 = inlined_call_operand.vmem [shape: bf16[1,128], index: 13, kind: input, shape index: {}]
  %s14 = inlined_call_operand.vmem [shape: bf16[128,128], index: 14, kind: input, shape index: {}]
  %s15 = inlined_call_operand.vmem [shape: bf16[1,128], index: 15, kind: input, shape index: {}]
  %s16 = inlined_call_operand.vmem [shape: bf16[128,128], index: 16, kind: input, shape index: {}]
  %s17 = inlined_call_operand.vmem [shape: bf16[1,128], index: 17, kind: input, shape index: {}]
  %s18 = inlined_call_operand.hbm [shape: f32[64,128], index: 18, kind: output, shape index: {}]
  %s19 = sld [smem:[#allocation0]]
  $region82: #{triplet_embedding_copoly.1} parent=0
    _
  %s21 = ssub.s32 1, %s19
  %s22 = scalar_select 0, %s21, %s19
  $region1: #{triplet_embedding_copoly.1} parent=0
    #allocation3 [shape = 'u8[32768]{0}', space=vmem, size = 0x8000, scoped, tag = 'output window, operand 0, single buffered']
    #allocation4 [shape = 's32[1]{0}', space=sflag, size = 0x4, scoped, tag = 'scoped memory for triplet_embedding_copoly.1']
    %23 = vsyncpa [#allocation4], 0
    // Predicated region
    $region2: #{triplet_embedding_copoly.1} parent=1 // pred_check
      _
    $region3: #{triplet_embedding_copoly.1} parent=1 // pred_check_branch
      %25 = sbr.rel (0) target = $region5
    $region4: #{triplet_embedding_copoly.1} parent=1 // pred_region
      _
    $region5: #{triplet_embedding_copoly.1} parent=1 // pred_fallthru
      _
    // Predicated region
    $region6: #{triplet_embedding_copoly.1} parent=1 // pred_check
      _
    $region7: #{triplet_embedding_copoly.1} parent=1 // pred_check_branch
      %27 = sbr.rel (0) target = $region9
    $region8: #{triplet_embedding_copoly.1} parent=1 // pred_region
      _
    $region9: #{triplet_embedding_copoly.1} parent=1 // pred_fallthru
      _
    // Predicated region
    $region10: #{triplet_embedding_copoly.1} parent=1 // pred_check
      _
    $region11: #{triplet_embedding_copoly.1} parent=1 // pred_check_branch
      %29 = sbr.rel (0) target = $region13
    $region12: #{triplet_embedding_copoly.1} parent=1 // pred_region
      _
    $region13: #{triplet_embedding_copoly.1} parent=1 // pred_fallthru
      _
    // Predicated region
    $region14: #{triplet_embedding_copoly.1} parent=1 // pred_check
      _
    $region15: #{triplet_embedding_copoly.1} parent=1 // pred_check_branch
      %31 = sbr.rel (0) target = $region17
    $region16: #{triplet_embedding_copoly.1} parent=1 // pred_region
      _
    $region17: #{triplet_embedding_copoly.1} parent=1 // pred_fallthru
      _
    // Predicated region
    $region18: #{triplet_embedding_copoly.1} parent=1 // pred_check
      _
    $region19: #{triplet_embedding_copoly.1} parent=1 // pred_check_branch
      %33 = sbr.rel (0) target = $region21
    $region20: #{triplet_embedding_copoly.1} parent=1 // pred_region
      _
    $region21: #{triplet_embedding_copoly.1} parent=1 // pred_fallthru
      _
    // Predicated region
    $region22: #{triplet_embedding_copoly.1} parent=1 // pred_check
      _
    $region23: #{triplet_embedding_copoly.1} parent=1 // pred_check_branch
      %35 = sbr.rel (0) target = $region25
    $region24: #{triplet_embedding_copoly.1} parent=1 // pred_region
      _
    $region25: #{triplet_embedding_copoly.1} parent=1 // pred_fallthru
      _
    // Predicated region
    $region26: #{triplet_embedding_copoly.1} parent=1 // pred_check
      _
    $region27: #{triplet_embedding_copoly.1} parent=1 // pred_check_branch
      %37 = sbr.rel (0) target = $region29
    $region28: #{triplet_embedding_copoly.1} parent=1 // pred_region
      _
    $region29: #{triplet_embedding_copoly.1} parent=1 // pred_fallthru
      _
    // Predicated region
    $region30: #{triplet_embedding_copoly.1} parent=1 // pred_check
      _
    $region31: #{triplet_embedding_copoly.1} parent=1 // pred_check_branch
      %39 = sbr.rel (0) target = $region33
    $region32: #{triplet_embedding_copoly.1} parent=1 // pred_region
      _
    $region33: #{triplet_embedding_copoly.1} parent=1 // pred_fallthru
      _
    // Predicated region
    $region34: #{triplet_embedding_copoly.1} parent=1 // pred_check
      _
    $region35: #{triplet_embedding_copoly.1} parent=1 // pred_check_branch
      %41 = sbr.rel (0) target = $region37
    $region36: #{triplet_embedding_copoly.1} parent=1 // pred_region
      _
    $region37: #{triplet_embedding_copoly.1} parent=1 // pred_fallthru
      _
    // Predicated region
    $region38: #{triplet_embedding_copoly.1} parent=1 // pred_check
      _
    $region39: #{triplet_embedding_copoly.1} parent=1 // pred_check_branch
      %43 = sbr.rel (0) target = $region41
    $region40: #{triplet_embedding_copoly.1} parent=1 // pred_region
      _
    $region41: #{triplet_embedding_copoly.1} parent=1 // pred_fallthru
      _
    // Predicated region
    $region42: #{triplet_embedding_copoly.1} parent=1 // pred_check
      _
    $region43: #{triplet_embedding_copoly.1} parent=1 // pred_check_branch
      %45 = sbr.rel (0) target = $region45
    $region44: #{triplet_embedding_copoly.1} parent=1 // pred_region
      _
    $region45: #{triplet_embedding_copoly.1} parent=1 // pred_fallthru
      _
    // Predicated region
    $region46: #{triplet_embedding_copoly.1} parent=1 // pred_check
      _
    $region47: #{triplet_embedding_copoly.1} parent=1 // pred_check_branch
      %47 = sbr.rel (0) target = $region49
    $region48: #{triplet_embedding_copoly.1} parent=1 // pred_region
      _
    $region49: #{triplet_embedding_copoly.1} parent=1 // pred_fallthru
      _
    // Predicated region
    $region50: #{triplet_embedding_copoly.1} parent=1 // pred_check
      _
    $region51: #{triplet_embedding_copoly.1} parent=1 // pred_check_branch
      %49 = sbr.rel (0) target = $region53
    $region52: #{triplet_embedding_copoly.1} parent=1 // pred_region
      _
    $region53: #{triplet_embedding_copoly.1} parent=1 // pred_fallthru
      _
    // Predicated region
    $region54: #{triplet_embedding_copoly.1} parent=1 // pred_check
      _
    $region55: #{triplet_embedding_copoly.1} parent=1 // pred_check_branch
      %51 = sbr.rel (0) target = $region57
    $region56: #{triplet_embedding_copoly.1} parent=1 // pred_region
      _
    $region57: #{triplet_embedding_copoly.1} parent=1 // pred_fallthru
      _
    // Predicated region
    $region58: #{triplet_embedding_copoly.1} parent=1 // pred_check
      _
    $region59: #{triplet_embedding_copoly.1} parent=1 // pred_check_branch
      %53 = sbr.rel (0) target = $region61
    $region60: #{triplet_embedding_copoly.1} parent=1 // pred_region
      _
    $region61: #{triplet_embedding_copoly.1} parent=1 // pred_fallthru
      _
    // Predicated region
    $region62: #{triplet_embedding_copoly.1} parent=1 // pred_check
      _
    $region63: #{triplet_embedding_copoly.1} parent=1 // pred_check_branch
      %55 = sbr.rel (0) target = $region65
    $region64: #{triplet_embedding_copoly.1} parent=1 // pred_region
      _
    $region65: #{triplet_embedding_copoly.1} parent=1 // pred_fallthru
      _
    // Predicated region
    $region66: #{triplet_embedding_copoly.1} parent=1 // pred_check
      _
    $region67: #{triplet_embedding_copoly.1} parent=1 // pred_check_branch
      %57 = sbr.rel (0) target = $region69
    $region68: #{triplet_embedding_copoly.1} parent=1 // pred_region
      _
    $region69: #{triplet_embedding_copoly.1} parent=1 // pred_fallthru
      _
    // Predicated region
    $region70: #{triplet_embedding_copoly.1} parent=1 // pred_check
      _
    $region71: #{triplet_embedding_copoly.1} parent=1 // pred_check_branch
      %59 = sbr.rel (0) target = $region73
    $region72: #{triplet_embedding_copoly.1} parent=1 // pred_region
      _
    $region73: #{triplet_embedding_copoly.1} parent=1 // pred_fallthru
      _
    %v61 = vld [vmem:[%s1] sm:$0xff]
    %v62 = vld [vmem:[%s10] sm:$0xf]
    %v63 = vld [vmem:[%s10 + $0x4] sm:$0xf]
    %v64 = vld [vmem:[%s10 + $0x8] sm:$0xf]
    %v65 = vld [vmem:[%s10 + $0xc] sm:$0xf]
    %v66 = vld [vmem:[%s10 + $0x10] sm:$0xf]
    %v67 = vld [vmem:[%s10 + $0x14] sm:$0xf]
    %v68 = vld [vmem:[%s10 + $0x18] sm:$0xf]
    %v69 = vld [vmem:[%s10 + $0x1c] sm:$0xf]
    %v70 = vld [vmem:[%s10 + $0x20] sm:$0xf]
    %v71 = vld [vmem:[%s10 + $0x24] sm:$0xf]
    %v72 = vld [vmem:[%s10 + $0x28] sm:$0xf]
    %v73 = vld [vmem:[%s10 + $0x2c] sm:$0xf]
    %v74 = vld [vmem:[%s10 + $0x30] sm:$0xf]
    %v75 = vld [vmem:[%s10 + $0x34] sm:$0xf]
    %v76 = vld [vmem:[%s10 + $0x38] sm:$0xf]
    %v77 = vld [vmem:[%s10 + $0x3c] sm:$0xf]
    %v78 = vld [vmem:[%s10 + $0x40] sm:$0xf]
    %v79 = vld [vmem:[%s10 + $0x44] sm:$0xf]
    %v80 = vld [vmem:[%s10 + $0x48] sm:$0xf]
    %v81 = vld [vmem:[%s10 + $0x4c] sm:$0xf]
    %v82 = vld [vmem:[%s10 + $0x50] sm:$0xf]
    %v83 = vld [vmem:[%s10 + $0x54] sm:$0xf]
    %v84 = vld [vmem:[%s10 + $0x58] sm:$0xf]
    %v85 = vld [vmem:[%s10 + $0x5c] sm:$0xf]
    %v86 = vld [vmem:[%s10 + $0x60] sm:$0xf]
    %v87 = vld [vmem:[%s10 + $0x64] sm:$0xf]
    %v88 = vld [vmem:[%s10 + $0x68] sm:$0xf]
    %v89 = vld [vmem:[%s10 + $0x6c] sm:$0xf]
    %v90 = vld [vmem:[%s10 + $0x70] sm:$0xf]
    %v91 = vld [vmem:[%s10 + $0x74] sm:$0xf]
    %v92 = vld [vmem:[%s10 + $0x78] sm:$0xf]
    %v93 = vld [vmem:[%s10 + $0x7c] sm:$0xf]
    %v94 = vld [vmem:[%s11] sm:$0x1]
    %v95 = vunpack.c.l.bf16 %v94
    %v96 = vlaneseq
    %v97 = vshrl.u32 %v96, 7
    %v98 = vsub.s32 0, %v97
    %v99 = vrot.slane %v95, %v98
    %v101 = vunpack.c.l.b16 %v61
    %v102 = vunpack.c.h.b16 %v61
    %v103 = vpack.c.b16 %v101, %v101
    %v104 = vpack.c.b16 %v102, %v102
    %v139 = vunpack.c.l.b16 %v62
    %v140 = vunpack.c.l.b16 %v63
    %v141 = vunpack.c.l.b16 %v64
    %v142 = vunpack.c.l.b16 %v65
    %v143 = vunpack.c.l.b16 %v66
    %v144 = vunpack.c.l.b16 %v67
    %v145 = vunpack.c.l.b16 %v68
    %v146 = vunpack.c.l.b16 %v69
    %v147 = vunpack.c.l.b16 %v70
    %v148 = vunpack.c.l.b16 %v71
    %v149 = vunpack.c.l.b16 %v72
    %v150 = vunpack.c.l.b16 %v73
    %v151 = vunpack.c.l.b16 %v74
    %v152 = vunpack.c.l.b16 %v75
    %v153 = vunpack.c.l.b16 %v76
    %v154 = vunpack.c.l.b16 %v77
    %v155 = vunpack.c.l.b16 %v78
    %v156 = vunpack.c.l.b16 %v79
    %v157 = vunpack.c.l.b16 %v80
    %v158 = vunpack.c.l.b16 %v81
    %v159 = vunpack.c.l.b16 %v82
    %v160 = vunpack.c.l.b16 %v83
    %v161 = vunpack.c.l.b16 %v84
    %v162 = vunpack.c.l.b16 %v85
    %v163 = vunpack.c.l.b16 %v86
    %v164 = vunpack.c.l.b16 %v87
    %v165 = vunpack.c.l.b16 %v88
    %v166 = vunpack.c.l.b16 %v89
    %v167 = vunpack.c.l.b16 %v90
    %v168 = vunpack.c.l.b16 %v91
    %v169 = vunpack.c.l.b16 %v92
    %v170 = vunpack.c.l.b16 %v93
    %v171 = vpack.c.b16 %v140, %v139
    %v172 = vpack.c.b16 %v142, %v141
    %v173 = vpack.c.b16 %v144, %v143
    %v174 = vpack.c.b16 %v146, %v145
    %v175 = vpack.c.b16 %v148, %v147
    %v176 = vpack.c.b16 %v150, %v149
    %v177 = vpack.c.b16 %v152, %v151
    %v178 = vpack.c.b16 %v154, %v153
    %v179 = vpack.c.b16 %v156, %v155
    %v180 = vpack.c.b16 %v158, %v157
    %v181 = vpack.c.b16 %v160, %v159
    %v182 = vpack.c.b16 %v162, %v161
    %v183 = vpack.c.b16 %v164, %v163
    %v184 = vpack.c.b16 %v166, %v165
    %v185 = vpack.c.b16 %v168, %v167
    %v186 = vpack.c.b16 %v170, %v169
    %203 = vmatprep.subr.bf16.mxu0 0
    %204 = vmatpush1.bf16.msra.mxu0 %v171
    %205 = vmatprep.subr.bf16.mxu0 0
    %206 = vmatpush1.bf16.msra.mxu0 %v172
    %207 = vmatprep.subr.bf16.mxu0 0
    %208 = vmatpush1.bf16.msra.mxu0 %v173
    %209 = vmatprep.subr.bf16.mxu0 0
    %210 = vmatpush1.bf16.msra.mxu0 %v174
    %211 = vmatprep.subr.bf16.mxu0 0
    %212 = vmatpush1.bf16.msra.mxu0 %v175
    %213 = vmatprep.subr.bf16.mxu0 0
    %214 = vmatpush1.bf16.msra.mxu0 %v176
    %215 = vmatprep.subr.bf16.mxu0 0
    %216 = vmatpush1.bf16.msra.mxu0 %v177
    %217 = vmatprep.subr.bf16.mxu0 0
    %218 = vmatpush1.bf16.msra.mxu0 %v178
    %219 = vmatprep.subr.bf16.mxu0 0
    %220 = vmatpush1.bf16.msra.mxu0 %v179
    %221 = vmatprep.subr.bf16.mxu0 0
    %222 = vmatpush1.bf16.msra.mxu0 %v180
    %223 = vmatprep.subr.bf16.mxu0 0
    %224 = vmatpush1.bf16.msra.mxu0 %v181
    %225 = vmatprep.subr.bf16.mxu0 0
    %226 = vmatpush1.bf16.msra.mxu0 %v182
    %227 = vmatprep.subr.bf16.mxu0 0
    %228 = vmatpush1.bf16.msra.mxu0 %v183
    %229 = vmatprep.subr.bf16.mxu0 0
    %230 = vmatpush1.bf16.msra.mxu0 %v184
    %231 = vmatprep.subr.bf16.mxu0 0
    %232 = vmatpush1.bf16.msra.mxu0 %v185
    %233 = vmatprep.subr.bf16.mxu0 0
    %234 = vmatpush1.bf16.msra.mxu0 %v186
    %235 = vmatprep.mubr.bf16.mxu0 %v104
    %236 = vmatmul.mubr.bf16.gmra.mrb[0].mxu0 %v103
    %v237 = vpop.f32.mrb[0].mxu0
    %v238 = vadd.f32 %v99, %v237
    %v239 = vpop.f32.mrb[0].mxu0
    %v240 = vpop.f32.mrb[0].mxu0
    %v241 = vpop.f32.mrb[0].mxu0
    %242 = vdwg.mxu0
    %v243 = vmul.f32 %v238, 0.5
    %v244 = vmul.f32 %v238, 0.70710677
    %v245 = verf.f32.pop %v244
    %v246 = vadd.f32 %v245, 1.0
    %v247 = vmul.f32 %v243, %v246
    %v248 = vld [vmem:[%s12] sm:$0xf]
    %v249 = vld [vmem:[%s12 + $0x4] sm:$0xf]
    %v250 = vld [vmem:[%s12 + $0x8] sm:$0xf]
    %v251 = vld [vmem:[%s12 + $0xc] sm:$0xf]
    %v252 = vld [vmem:[%s12 + $0x10] sm:$0xf]
    %v253 = vld [vmem:[%s12 + $0x14] sm:$0xf]
    %v254 = vld [vmem:[%s12 + $0x18] sm:$0xf]
    %v255 = vld [vmem:[%s12 + $0x1c] sm:$0xf]
    %v256 = vld [vmem:[%s12 + $0x20] sm:$0xf]
    %v257 = vld [vmem:[%s12 + $0x24] sm:$0xf]
    %v258 = vld [vmem:[%s12 + $0x28] sm:$0xf]
    %v259 = vld [vmem:[%s12 + $0x2c] sm:$0xf]
    %v260 = vld [vmem:[%s12 + $0x30] sm:$0xf]
    %v261 = vld [vmem:[%s12 + $0x34] sm:$0xf]
    %v262 = vld [vmem:[%s12 + $0x38] sm:$0xf]
    %v263 = vld [vmem:[%s12 + $0x3c] sm:$0xf]
    %v264 = vld [vmem:[%s13] sm:$0x1]
    %v265 = vunpack.c.l.bf16 %v264
    %v266 = vlaneseq
    %v267 = vshrl.u32 %v266, 7
    %v268 = vsub.s32 0, %v267
    %v269 = vrot.slane %v265, %v268
    %v286 = vunpack.c.l.b16 %v248
    %v287 = vunpack.c.l.b16 %v249
    %v288 = vunpack.c.l.b16 %v250
    %v289 = vunpack.c.l.b16 %v251
    %v290 = vunpack.c.l.b16 %v252
    %v291 = vunpack.c.l.b16 %v253
    %v292 = vunpack.c.l.b16 %v254
    %v293 = vunpack.c.l.b16 %v255
    %v294 = vunpack.c.l.b16 %v256
    %v295 = vunpack.c.l.b16 %v257
    %v296 = vunpack.c.l.b16 %v258
    %v297 = vunpack.c.l.b16 %v259
    %v298 = vunpack.c.l.b16 %v260
    %v299 = vunpack.c.l.b16 %v261
    %v300 = vunpack.c.l.b16 %v262
    %v301 = vunpack.c.l.b16 %v263
    %v302 = vpack.c.b16 %v287, %v286
    %v303 = vpack.c.b16 %v289, %v288
    %v304 = vpack.c.b16 %v291, %v290
    %v305 = vpack.c.b16 %v293, %v292
    %v306 = vpack.c.b16 %v295, %v294
    %v307 = vpack.c.b16 %v297, %v296
    %v308 = vpack.c.b16 %v299, %v298
    %v309 = vpack.c.b16 %v301, %v300
    %318 = vmatprep.subr.bf16.mxu0 0
    %319 = vmatpush1.bf16.msra.mxu0 %v302
    %320 = vmatprep.subr.bf16.mxu0 0
    %321 = vmatpush1.bf16.msra.mxu0 %v303
    %322 = vmatprep.subr.bf16.mxu0 0
    %323 = vmatpush1.bf16.msra.mxu0 %v304
    %324 = vmatprep.subr.bf16.mxu0 0
    %325 = vmatpush1.bf16.msra.mxu0 %v305
    %326 = vmatprep.subr.bf16.mxu0 0
    %327 = vmatpush1.bf16.msra.mxu0 %v306
    %328 = vmatprep.subr.bf16.mxu0 0
    %329 = vmatpush1.bf16.msra.mxu0 %v307
    %330 = vmatprep.subr.bf16.mxu0 0
    %331 = vmatpush1.bf16.msra.mxu0 %v308
    %332 = vmatprep.subr.bf16.mxu0 0
    %333 = vmatpush1.bf16.msra.mxu0 %v309
    %334 = vmatprep.subr.bf16.mxu0 0
    %335 = vmatpush1.bf16.msra.mxu0 0
    %336 = vmatprep.subr.bf16.mxu0 0
    %337 = vmatpush1.bf16.msra.mxu0 0
    %338 = vmatprep.subr.bf16.mxu0 0
    %339 = vmatpush1.bf16.msra.mxu0 0
    %340 = vmatprep.subr.bf16.mxu0 0
    %341 = vmatpush1.bf16.msra.mxu0 0
    %342 = vmatprep.subr.bf16.mxu0 0
    %343 = vmatpush1.bf16.msra.mxu0 0
    %344 = vmatprep.subr.bf16.mxu0 0
    %345 = vmatpush1.bf16.msra.mxu0 0
    %346 = vmatprep.subr.bf16.mxu0 0
    %347 = vmatpush1.bf16.msra.mxu0 0
    %348 = vmatprep.subr.bf16.mxu0 0
    %349 = vmatpush1.bf16.msra.mxu0 0
    %350 = vmatprep.mubr.f32.mxu0 0.0
    %351 = vmatmul.mubr.f32.gmra.mrb[0].mxu0 %v247
    %v352 = vpop.f32.mrb[0].mxu0
    %v353 = vadd.f32 %v269, %v352
    %v354 = vpop.f32.mrb[0].mxu0
    %355 = vdwg.mxu0
    %356 = vst [vmem:[#allocation2] sm:$0xff] %v353
    %v357 = vld [vmem:[%s2] sm:$0xf]
    %v358 = vld [vmem:[%s14] sm:$0xf]
    %v359 = vld [vmem:[%s14 + $0x4] sm:$0xf]
    %v360 = vld [vmem:[%s14 + $0x8] sm:$0xf]
    %v361 = vld [vmem:[%s14 + $0xc] sm:$0xf]
    %v362 = vld [vmem:[%s14 + $0x10] sm:$0xf]
    %v363 = vld [vmem:[%s14 + $0x14] sm:$0xf]
    %v364 = vld [vmem:[%s14 + $0x18] sm:$0xf]
    %v365 = vld [vmem:[%s14 + $0x1c] sm:$0xf]
    %v366 = vld [vmem:[%s14 + $0x20] sm:$0xf]
    %v367 = vld [vmem:[%s14 + $0x24] sm:$0xf]
    %v368 = vld [vmem:[%s14 + $0x28] sm:$0xf]
    %v369 = vld [vmem:[%s14 + $0x2c] sm:$0xf]
    %v370 = vld [vmem:[%s14 + $0x30] sm:$0xf]
    %v371 = vld [vmem:[%s14 + $0x34] sm:$0xf]
    %v372 = vld [vmem:[%s14 + $0x38] sm:$0xf]
    %v373 = vld [vmem:[%s14 + $0x3c] sm:$0xf]
    %v374 = vld [vmem:[%s15] sm:$0x1]
    %v375 = vunpack.c.l.bf16 %v374
    %v376 = vlaneseq
    %v377 = vshrl.u32 %v376, 7
    %v378 = vsub.s32 0, %v377
    %v379 = vrot.slane %v375, %v378
    %v396 = vunpack.c.l.b16 %v358
    %v397 = vunpack.c.l.b16 %v359
    %v398 = vunpack.c.l.b16 %v360
    %v399 = vunpack.c.l.b16 %v361
    %v400 = vunpack.c.l.b16 %v362
    %v401 = vunpack.c.l.b16 %v363
    %v402 = vunpack.c.l.b16 %v364
    %v403 = vunpack.c.l.b16 %v365
    %v404 = vunpack.c.l.b16 %v366
    %v405 = vunpack.c.l.b16 %v367
    %v406 = vunpack.c.l.b16 %v368
    %v407 = vunpack.c.l.b16 %v369
    %v408 = vunpack.c.l.b16 %v370
    %v409 = vunpack.c.l.b16 %v371
    %v410 = vunpack.c.l.b16 %v372
    %v411 = vunpack.c.l.b16 %v373
    %v412 = vpack.c.b16 %v397, %v396
    %v413 = vpack.c.b16 %v399, %v398
    %v414 = vpack.c.b16 %v401, %v400
    %v415 = vpack.c.b16 %v403, %v402
    %v416 = vpack.c.b16 %v405, %v404
    %v417 = vpack.c.b16 %v407, %v406
    %v418 = vpack.c.b16 %v409, %v408
    %v419 = vpack.c.b16 %v411, %v410
    %428 = vmatprep.subr.bf16.mxu0 0
    %429 = vmatpush1.bf16.msra.mxu0 %v412
    %430 = vmatprep.subr.bf16.mxu0 0
    %431 = vmatpush1.bf16.msra.mxu0 %v413
    %432 = vmatprep.subr.bf16.mxu0 0
    %433 = vmatpush1.bf16.msra.mxu0 %v414
    %434 = vmatprep.subr.bf16.mxu0 0
    %435 = vmatpush1.bf16.msra.mxu0 %v415
    %436 = vmatprep.subr.bf16.mxu0 0
    %437 = vmatpush1.bf16.msra.mxu0 %v416
    %438 = vmatprep.subr.bf16.mxu0 0
    %439 = vmatpush1.bf16.msra.mxu0 %v417
    %440 = vmatprep.subr.bf16.mxu0 0
    %441 = vmatpush1.bf16.msra.mxu0 %v418
    %442 = vmatprep.subr.bf16.mxu0 0
    %443 = vmatpush1.bf16.msra.mxu0 %v419
    %444 = vmatprep.subr.bf16.mxu0 0
    %445 = vmatpush1.bf16.msra.mxu0 0
    %446 = vmatprep.subr.bf16.mxu0 0
    %447 = vmatpush1.bf16.msra.mxu0 0
    %448 = vmatprep.subr.bf16.mxu0 0
    %449 = vmatpush1.bf16.msra.mxu0 0
    %450 = vmatprep.subr.bf16.mxu0 0
    %451 = vmatpush1.bf16.msra.mxu0 0
    %452 = vmatprep.subr.bf16.mxu0 0
    %453 = vmatpush1.bf16.msra.mxu0 0
    %454 = vmatprep.subr.bf16.mxu0 0
    %455 = vmatpush1.bf16.msra.mxu0 0
    %456 = vmatprep.subr.bf16.mxu0 0
    %457 = vmatpush1.bf16.msra.mxu0 0
    %458 = vmatprep.subr.bf16.mxu0 0
    %459 = vmatpush1.bf16.msra.mxu0 0
    %460 = vmatprep.mubr.bf16.mxu0 0
    %461 = vmatmul.mubr.bf16.gmra.mrb[0].mxu0 %v357
    %v462 = vpop.f32.mrb[0].mxu0
    %v463 = vadd.f32 %v379, %v462
    %v464 = vpop.f32.mrb[0].mxu0
    %v465 = vpop.f32.mrb[0].mxu0
    %v466 = vpop.f32.mrb[0].mxu0
    %467 = vdwg.mxu0
    %v468 = vmul.f32 %v463, 0.5
    %v469 = vmul.f32 %v463, 0.70710677
    %v470 = verf.f32.pop %v469
    %v471 = vadd.f32 %v470, 1.0
    %v472 = vmul.f32 %v468, %v471
    %v473 = vld [vmem:[%s16] sm:$0xf]
    %v474 = vld [vmem:[%s16 + $0x4] sm:$0xf]
    %v475 = vld [vmem:[%s16 + $0x8] sm:$0xf]
    %v476 = vld [vmem:[%s16 + $0xc] sm:$0xf]
    %v477 = vld [vmem:[%s16 + $0x10] sm:$0xf]
    %v478 = vld [vmem:[%s16 + $0x14] sm:$0xf]
    %v479 = vld [vmem:[%s16 + $0x18] sm:$0xf]
    %v480 = vld [vmem:[%s16 + $0x1c] sm:$0xf]
    %v481 = vld [vmem:[%s16 + $0x20] sm:$0xf]
    %v482 = vld [vmem:[%s16 + $0x24] sm:$0xf]
    %v483 = vld [vmem:[%s16 + $0x28] sm:$0xf]
    %v484 = vld [vmem:[%s16 + $0x2c] sm:$0xf]
    %v485 = vld [vmem:[%s16 + $0x30] sm:$0xf]
    %v486 = vld [vmem:[%s16 + $0x34] sm:$0xf]
    %v487 = vld [vmem:[%s16 + $0x38] sm:$0xf]
    %v488 = vld [vmem:[%s16 + $0x3c] sm:$0xf]
    %v489 = vld [vmem:[%s17] sm:$0x1]
    %v490 = vunpack.c.l.bf16 %v489
    %v491 = vlaneseq
    %v492 = vshrl.u32 %v491, 7
    %v493 = vsub.s32 0, %v492
    %v494 = vrot.slane %v490, %v493
    %v511 = vunpack.c.l.b16 %v473
    %v512 = vunpack.c.l.b16 %v474
    %v513 = vunpack.c.l.b16 %v475
    %v514 = vunpack.c.l.b16 %v476
    %v515 = vunpack.c.l.b16 %v477
    %v516 = vunpack.c.l.b16 %v478
    %v517 = vunpack.c.l.b16 %v479
    %v518 = vunpack.c.l.b16 %v480
    %v519 = vunpack.c.l.b16 %v481
    %v520 = vunpack.c.l.b16 %v482
    %v521 = vunpack.c.l.b16 %v483
    %v522 = vunpack.c.l.b16 %v484
    %v523 = vunpack.c.l.b16 %v485
    %v524 = vunpack.c.l.b16 %v486
    %v525 = vunpack.c.l.b16 %v487
    %v526 = vunpack.c.l.b16 %v488
    %v527 = vpack.c.b16 %v512, %v511
    %v528 = vpack.c.b16 %v514, %v513
    %v529 = vpack.c.b16 %v516, %v515
    %v530 = vpack.c.b16 %v518, %v517
    %v531 = vpack.c.b16 %v520, %v519
    %v532 = vpack.c.b16 %v522, %v521
    %v533 = vpack.c.b16 %v524, %v523
    %v534 = vpack.c.b16 %v526, %v525
    %543 = vmatprep.subr.bf16.mxu0 0
    %544 = vmatpush1.bf16.msra.mxu0 %v527
    %545 = vmatprep.subr.bf16.mxu0 0
    %546 = vmatpush1.bf16.msra.mxu0 %v528
    %547 = vmatprep.subr.bf16.mxu0 0
    %548 = vmatpush1.bf16.msra.mxu0 %v529
    %549 = vmatprep.subr.bf16.mxu0 0
    %550 = vmatpush1.bf16.msra.mxu0 %v530
    %551 = vmatprep.subr.bf16.mxu0 0
    %552 = vmatpush1.bf16.msra.mxu0 %v531
    %553 = vmatprep.subr.bf16.mxu0 0
    %554 = vmatpush1.bf16.msra.mxu0 %v532
    %555 = vmatprep.subr.bf16.mxu0 0
    %556 = vmatpush1.bf16.msra.mxu0 %v533
    %557 = vmatprep.subr.bf16.mxu0 0
    %558 = vmatpush1.bf16.msra.mxu0 %v534
    %559 = vmatprep.subr.bf16.mxu0 0
    %560 = vmatpush1.bf16.msra.mxu0 0
    %561 = vmatprep.subr.bf16.mxu0 0
    %562 = vmatpush1.bf16.msra.mxu0 0
    %563 = vmatprep.subr.bf16.mxu0 0
    %564 = vmatpush1.bf16.msra.mxu0 0
    %565 = vmatprep.subr.bf16.mxu0 0
    %566 = vmatpush1.bf16.msra.mxu0 0
    %567 = vmatprep.subr.bf16.mxu0 0
    %568 = vmatpush1.bf16.msra.mxu0 0
    %569 = vmatprep.subr.bf16.mxu0 0
    %570 = vmatpush1.bf16.msra.mxu0 0
    %571 = vmatprep.subr.bf16.mxu0 0
    %572 = vmatpush1.bf16.msra.mxu0 0
    %573 = vmatprep.subr.bf16.mxu0 0
    %574 = vmatpush1.bf16.msra.mxu0 0
    %575 = vmatprep.mubr.f32.mxu0 0.0
    %576 = vmatmul.mubr.f32.gmra.mrb[0].mxu0 %v472
    %v577 = vpop.f32.mrb[0].mxu0
    %v578 = vadd.f32 %v494, %v577
    %v579 = vpop.f32.mrb[0].mxu0
    %580 = vdwg.mxu0
    %581 = vst [vmem:[#allocation2 + $0x8] sm:$0xff] %v578
    %v582 = vld [vmem:[%s3] sm:$0xf]
    %v583 = vld [vmem:[%s3 + $0x4] sm:$0xf]
    %v584 = vld [vmem:[%s3 + $0x8] sm:$0xf]
    %v585 = vld [vmem:[%s3 + $0xc] sm:$0xf]
    %v586 = vld [vmem:[%s3 + $0x10] sm:$0xf]
    %v587 = vld [vmem:[%s3 + $0x14] sm:$0xf]
    %v588 = vld [vmem:[%s3 + $0x18] sm:$0xf]
    %v589 = vld [vmem:[%s3 + $0x1c] sm:$0xf]
    %v590 = vld [vmem:[%s3 + $0x20] sm:$0xf]
    %v591 = vld [vmem:[%s3 + $0x24] sm:$0xf]
    %v592 = vld [vmem:[%s3 + $0x28] sm:$0xf]
    %v593 = vld [vmem:[%s3 + $0x2c] sm:$0xf]
    %v594 = vld [vmem:[%s3 + $0x30] sm:$0xf]
    %v595 = vunpack.c.l.bf16 %v582
    %v596 = vunpack.c.l.bf16 %v583
    %v597 = vunpack.c.l.bf16 %v584
    %v598 = vunpack.c.l.bf16 %v585
    %v599 = vunpack.c.l.bf16 %v586
    %v600 = vunpack.c.l.bf16 %v587
    %v601 = vunpack.c.l.bf16 %v588
    %v602 = vunpack.c.l.bf16 %v589
    %v603 = vunpack.c.l.bf16 %v590
    %v604 = vunpack.c.l.bf16 %v591
    %v605 = vunpack.c.l.bf16 %v592
    %v606 = vunpack.c.l.bf16 %v593
    %v607 = vunpack.c.l.bf16 %v594
    %608 = vst [vmem:[#allocation2 + $0x10] sm:$0xff] %v595
    %609 = vst [vmem:[#allocation2 + $0x18] sm:$0xff] %v596
    %610 = vst [vmem:[#allocation2 + $0x20] sm:$0xff] %v597
    %611 = vst [vmem:[#allocation2 + $0x28] sm:$0xff] %v598
    %612 = vst [vmem:[#allocation2 + $0x30] sm:$0xff] %v599
    %613 = vst [vmem:[#allocation2 + $0x38] sm:$0xff] %v600
    %614 = vst [vmem:[#allocation2 + $0x40] sm:$0xff] %v601
    %615 = vst [vmem:[#allocation2 + $0x48] sm:$0xff] %v602
    %616 = vst [vmem:[#allocation2 + $0x50] sm:$0xff] %v603
    %617 = vst [vmem:[#allocation2 + $0x58] sm:$0xff] %v604
    %618 = vst [vmem:[#allocation2 + $0x60] sm:$0xff] %v605
    %619 = vst [vmem:[#allocation2 + $0x68] sm:$0xff] %v606
    %620 = vst [vmem:[#allocation2 + $0x70] sm:$0xff] %v607
    %v621 = vld [vmem:[%s4] sm:$0xf]
    %v622 = vunpack.c.l.bf16 %v621
    %623 = vst [vmem:[#allocation2 + $0x78] sm:$0xff] %v622
    %v624 = vld [vmem:[%s0] sm:$0xff]
    %v625 = vld [vmem:[%s0 + $0x8] sm:$0xff]
    %v626 = vld [vmem:[%s0 + $0x10] sm:$0xff]
    %v627 = vld [vmem:[%s0 + $0x18] sm:$0xff]
    %v628 = vld [vmem:[%s0 + $0x20] sm:$0xff]
    %v629 = vld [vmem:[%s0 + $0x28] sm:$0xff]
    %v630 = vld [vmem:[%s0 + $0x30] sm:$0xff]
    %v631 = vld [vmem:[%s0 + $0x38] sm:$0xff]
    %v632 = vld [vmem:[%s6] sm:$0xf]
    %v633 = vld [vmem:[%s6 + $0x4] sm:$0xf]
    %v634 = vld [vmem:[%s6 + $0x8] sm:$0xf]
    %v635 = vld [vmem:[%s6 + $0xc] sm:$0xf]
    %v636 = vld [vmem:[%s6 + $0x10] sm:$0xf]
    %v637 = vld [vmem:[%s6 + $0x14] sm:$0xf]
    %v638 = vld [vmem:[%s6 + $0x18] sm:$0xf]
    %v639 = vld [vmem:[%s6 + $0x1c] sm:$0xf]
    %v640 = vld [vmem:[%s6 + $0x20] sm:$0xf]
    %v641 = vld [vmem:[%s6 + $0x24] sm:$0xf]
    %v642 = vld [vmem:[%s6 + $0x28] sm:$0xf]
    %v643 = vld [vmem:[%s6 + $0x2c] sm:$0xf]
    %v644 = vld [vmem:[%s6 + $0x30] sm:$0xf]
    %v645 = vld [vmem:[%s6 + $0x34] sm:$0xf]
    %v646 = vld [vmem:[%s6 + $0x38] sm:$0xf]
    %v647 = vld [vmem:[%s6 + $0x3c] sm:$0xf]
    %v648 = vld [vmem:[%s6 + $0x40] sm:$0xf]
    %v649 = vld [vmem:[%s6 + $0x44] sm:$0xf]
    %v650 = vld [vmem:[%s6 + $0x48] sm:$0xf]
    %v651 = vld [vmem:[%s6 + $0x4c] sm:$0xf]
    %v652 = vld [vmem:[%s6 + $0x50] sm:$0xf]
    %v653 = vld [vmem:[%s6 + $0x54] sm:$0xf]
    %v654 = vld [vmem:[%s6 + $0x58] sm:$0xf]
    %v655 = vld [vmem:[%s6 + $0x5c] sm:$0xf]
    %v656 = vld [vmem:[%s6 + $0x60] sm:$0xf]
    %v657 = vld [vmem:[%s6 + $0x64] sm:$0xf]
    %v658 = vld [vmem:[%s6 + $0x68] sm:$0xf]
    %v659 = vld [vmem:[%s6 + $0x6c] sm:$0xf]
    %v660 = vld [vmem:[%s6 + $0x70] sm:$0xf]
    %v661 = vld [vmem:[%s6 + $0x74] sm:$0xf]
    %v662 = vld [vmem:[%s6 + $0x78] sm:$0xf]
    %v663 = vld [vmem:[%s6 + $0x7c] sm:$0xf]
    %v664 = vld [vmem:[%s7] sm:$0x1]
    %v665 = vunpack.c.l.bf16 %v664
    %v666 = vlaneseq
    %v667 = vshrl.u32 %v666, 7
    %v668 = vsub.s32 0, %v667
    %v669 = vrot.slane %v665, %v668
    %v678 = vunpack.c.l.b16 %v624
    %v679 = vunpack.c.h.b16 %v624
    %v680 = vunpack.c.l.b16 %v625
    %v681 = vunpack.c.h.b16 %v625
    %v682 = vunpack.c.l.b16 %v626
    %v683 = vunpack.c.h.b16 %v626
    %v684 = vunpack.c.l.b16 %v627
    %v685 = vunpack.c.h.b16 %v627
    %v686 = vunpack.c.l.b16 %v628
    %v687 = vunpack.c.h.b16 %v628
    %v688 = vunpack.c.l.b16 %v629
    %v689 = vunpack.c.h.b16 %v629
    %v690 = vunpack.c.l.b16 %v630
    %v691 = vunpack.c.h.b16 %v630
    %v692 = vunpack.c.l.b16 %v631
    %v693 = vunpack.c.h.b16 %v631
    %v694 = vpack.c.b16 %v680, %v678
    %v695 = vpack.c.b16 %v681, %v679
    %v696 = vpack.c.b16 %v684, %v682
    %v697 = vpack.c.b16 %v685, %v683
    %v698 = vpack.c.b16 %v688, %v686
    %v699 = vpack.c.b16 %v689, %v687
    %v700 = vpack.c.b16 %v692, %v690
    %v701 = vpack.c.b16 %v693, %v691
    %v742 = vunpack.c.l.b16 %v632
    %v743 = vunpack.c.l.b16 %v633
    %v744 = vunpack.c.l.b16 %v634
    %v745 = vunpack.c.l.b16 %v635
    %v746 = vunpack.c.l.b16 %v636
    %v747 = vunpack.c.l.b16 %v637
    %v748 = vunpack.c.l.b16 %v638
    %v749 = vunpack.c.l.b16 %v639
    %v750 = vunpack.c.l.b16 %v640
    %v751 = vunpack.c.l.b16 %v641
    %v752 = vunpack.c.l.b16 %v642
    %v753 = vunpack.c.l.b16 %v643
    %v754 = vunpack.c.l.b16 %v644
    %v755 = vunpack.c.l.b16 %v645
    %v756 = vunpack.c.l.b16 %v646
    %v757 = vunpack.c.l.b16 %v647
    %v758 = vunpack.c.l.b16 %v648
    %v759 = vunpack.c.l.b16 %v649
    %v760 = vunpack.c.l.b16 %v650
    %v761 = vunpack.c.l.b16 %v651
    %v762 = vunpack.c.l.b16 %v652
    %v763 = vunpack.c.l.b16 %v653
    %v764 = vunpack.c.l.b16 %v654
    %v765 = vunpack.c.l.b16 %v655
    %v766 = vunpack.c.l.b16 %v656
    %v767 = vunpack.c.l.b16 %v657
    %v768 = vunpack.c.l.b16 %v658
    %v769 = vunpack.c.l.b16 %v659
    %v770 = vunpack.c.l.b16 %v660
    %v771 = vunpack.c.l.b16 %v661
    %v772 = vunpack.c.l.b16 %v662
    %v773 = vunpack.c.l.b16 %v663
    %v774 = vpack.c.b16 %v743, %v742
    %v775 = vpack.c.b16 %v745, %v744
    %v776 = vpack.c.b16 %v747, %v746
    %v777 = vpack.c.b16 %v749, %v748
    %v778 = vpack.c.b16 %v751, %v750
    %v779 = vpack.c.b16 %v753, %v752
    %v780 = vpack.c.b16 %v755, %v754
    %v781 = vpack.c.b16 %v757, %v756
    %v782 = vpack.c.b16 %v759, %v758
    %v783 = vpack.c.b16 %v761, %v760
    %v784 = vpack.c.b16 %v763, %v762
    %v785 = vpack.c.b16 %v765, %v764
    %v786 = vpack.c.b16 %v767, %v766
    %v787 = vpack.c.b16 %v769, %v768
    %v788 = vpack.c.b16 %v771, %v770
    %v789 = vpack.c.b16 %v773, %v772
    %806 = vmatprep.subr.bf16.mxu0 0
    %807 = vmatpush1.bf16.msra.mxu0 %v774
    %808 = vmatprep.subr.bf16.mxu0 0
    %809 = vmatpush1.bf16.msra.mxu0 %v775
    %810 = vmatprep.subr.bf16.mxu0 0
    %811 = vmatpush1.bf16.msra.mxu0 %v776
    %812 = vmatprep.subr.bf16.mxu0 0
    %813 = vmatpush1.bf16.msra.mxu0 %v777
    %814 = vmatprep.subr.bf16.mxu0 0
    %815 = vmatpush1.bf16.msra.mxu0 %v778
    %816 = vmatprep.subr.bf16.mxu0 0
    %817 = vmatpush1.bf16.msra.mxu0 %v779
    %818 = vmatprep.subr.bf16.mxu0 0
    %819 = vmatpush1.bf16.msra.mxu0 %v780
    %820 = vmatprep.subr.bf16.mxu0 0
    %821 = vmatpush1.bf16.msra.mxu0 %v781
    %822 = vmatprep.subr.bf16.mxu0 0
    %823 = vmatpush1.bf16.msra.mxu0 %v782
    %824 = vmatprep.subr.bf16.mxu0 0
    %825 = vmatpush1.bf16.msra.mxu0 %v783
    %826 = vmatprep.subr.bf16.mxu0 0
    %827 = vmatpush1.bf16.msra.mxu0 %v784
    %828 = vmatprep.subr.bf16.mxu0 0
    %829 = vmatpush1.bf16.msra.mxu0 %v785
    %830 = vmatprep.subr.bf16.mxu0 0
    %831 = vmatpush1.bf16.msra.mxu0 %v786
    %832 = vmatprep.subr.bf16.mxu0 0
    %833 = vmatpush1.bf16.msra.mxu0 %v787
    %834 = vmatprep.subr.bf16.mxu0 0
    %835 = vmatpush1.bf16.msra.mxu0 %v788
    %836 = vmatprep.subr.bf16.mxu0 0
    %837 = vmatpush1.bf16.msra.mxu0 %v789
    %838 = vmatprep.mubr.bf16.mxu0 %v695
    %839 = vmatmul.mubr.bf16.gmra.mrb[0].mxu0 %v694
    %v840 = vpop.f32.mrb[0].mxu0
    %v841 = vadd.f32 %v669, %v840
    %v842 = vpop.f32.mrb[0].mxu0
    %v843 = vpop.f32.mrb[0].mxu0
    %v844 = vadd.f32 %v669, %v843
    %v845 = vpop.f32.mrb[0].mxu0
    %846 = vmatprep.mubr.bf16.mxu0 %v697
    %847 = vmatmul.mubr.bf16.gmra.mrb[0].mxu0 %v696
    %v848 = vpop.f32.mrb[0].mxu0
    %v849 = vadd.f32 %v669, %v848
    %v850 = vpop.f32.mrb[0].mxu0
    %v851 = vpop.f32.mrb[0].mxu0
    %v852 = vadd.f32 %v669, %v851
    %v853 = vpop.f32.mrb[0].mxu0
    %854 = vmatprep.mubr.bf16.mxu0 %v699
    %855 = vmatmul.mubr.bf16.gmra.mrb[0].mxu0 %v698
    %v856 = vpop.f32.mrb[0].mxu0
    %v857 = vadd.f32 %v669, %v856
    %v858 = vpop.f32.mrb[0].mxu0
    %v859 = vpop.f32.mrb[0].mxu0
    %v860 = vadd.f32 %v669, %v859
    %v861 = vpop.f32.mrb[0].mxu0
    %862 = vmatprep.mubr.bf16.mxu0 %v701
    %863 = vmatmul.mubr.bf16.gmra.mrb[0].mxu0 %v700
    %v864 = vpop.f32.mrb[0].mxu0
    %v865 = vadd.f32 %v669, %v864
    %v866 = vpop.f32.mrb[0].mxu0
    %v867 = vpop.f32.mrb[0].mxu0
    %v868 = vadd.f32 %v669, %v867
    %v869 = vpop.f32.mrb[0].mxu0
    %870 = vdwg.mxu0
    %v871 = vmul.f32 %v841, 0.5
    %v872 = vmul.f32 %v844, 0.5
    %v873 = vmul.f32 %v849, 0.5
    %v874 = vmul.f32 %v852, 0.5
    %v875 = vmul.f32 %v857, 0.5
    %v876 = vmul.f32 %v860, 0.5
    %v877 = vmul.f32 %v865, 0.5
    %v878 = vmul.f32 %v868, 0.5
    %v879 = vmul.f32 %v841, 0.70710677
    %v880 = vmul.f32 %v844, 0.70710677
    %v881 = vmul.f32 %v849, 0.70710677
    %v882 = vmul.f32 %v852, 0.70710677
    %v883 = vmul.f32 %v857, 0.70710677
    %v884 = vmul.f32 %v860, 0.70710677
    %v885 = vmul.f32 %v865, 0.70710677
    %v886 = vmul.f32 %v868, 0.70710677
    %v887 = verf.f32.pop %v879
    %v888 = verf.f32.pop %v880
    %v889 = verf.f32.pop %v881
    %v890 = verf.f32.pop %v882
    %v891 = verf.f32.pop %v883
    %v892 = verf.f32.pop %v884
    %v893 = verf.f32.pop %v885
    %v894 = verf.f32.pop %v886
    %v895 = vadd.f32 %v887, 1.0
    %v896 = vadd.f32 %v888, 1.0
    %v897 = vadd.f32 %v889, 1.0
    %v898 = vadd.f32 %v890, 1.0
    %v899 = vadd.f32 %v891, 1.0
    %v900 = vadd.f32 %v892, 1.0
    %v901 = vadd.f32 %v893, 1.0
    %v902 = vadd.f32 %v894, 1.0
    %v903 = vmul.f32 %v871, %v895
    %v904 = vmul.f32 %v872, %v896
    %v905 = vmul.f32 %v873, %v897
    %v906 = vmul.f32 %v874, %v898
    %v907 = vmul.f32 %v875, %v899
    %v908 = vmul.f32 %v876, %v900
    %v909 = vmul.f32 %v877, %v901
    %v910 = vmul.f32 %v878, %v902
    %v911 = vld [vmem:[%s8] sm:$0xf]
    %v912 = vld [vmem:[%s8 + $0x4] sm:$0xf]
    %v913 = vld [vmem:[%s8 + $0x8] sm:$0xf]
    %v914 = vld [vmem:[%s8 + $0xc] sm:$0xf]
    %v915 = vld [vmem:[%s8 + $0x10] sm:$0xf]
    %v916 = vld [vmem:[%s8 + $0x14] sm:$0xf]
    %v917 = vld [vmem:[%s8 + $0x18] sm:$0xf]
    %v918 = vld [vmem:[%s8 + $0x1c] sm:$0xf]
    %v919 = vld [vmem:[%s8 + $0x20] sm:$0xf]
    %v920 = vld [vmem:[%s8 + $0x24] sm:$0xf]
    %v921 = vld [vmem:[%s8 + $0x28] sm:$0xf]
    %v922 = vld [vmem:[%s8 + $0x2c] sm:$0xf]
    %v923 = vld [vmem:[%s8 + $0x30] sm:$0xf]
    %v924 = vld [vmem:[%s8 + $0x34] sm:$0xf]
    %v925 = vld [vmem:[%s8 + $0x38] sm:$0xf]
    %v926 = vld [vmem:[%s8 + $0x3c] sm:$0xf]
    %v927 = vld [vmem:[%s9] sm:$0x1]
    %v928 = vunpack.c.l.bf16 %v927
    %v929 = vlaneseq
    %v930 = vshrl.u32 %v929, 7
    %v931 = vsub.s32 0, %v930
    %v932 = vrot.slane %v928, %v931
    %v949 = vunpack.c.l.b16 %v911
    %v950 = vunpack.c.l.b16 %v912
    %v951 = vunpack.c.l.b16 %v913
    %v952 = vunpack.c.l.b16 %v914
    %v953 = vunpack.c.l.b16 %v915
    %v954 = vunpack.c.l.b16 %v916
    %v955 = vunpack.c.l.b16 %v917
    %v956 = vunpack.c.l.b16 %v918
    %v957 = vunpack.c.l.b16 %v919
    %v958 = vunpack.c.l.b16 %v920
    %v959 = vunpack.c.l.b16 %v921
    %v960 = vunpack.c.l.b16 %v922
    %v961 = vunpack.c.l.b16 %v923
    %v962 = vunpack.c.l.b16 %v924
    %v963 = vunpack.c.l.b16 %v925
    %v964 = vunpack.c.l.b16 %v926
    %v965 = vpack.c.b16 %v950, %v949
    %v966 = vpack.c.b16 %v952, %v951
    %v967 = vpack.c.b16 %v954, %v953
    %v968 = vpack.c.b16 %v956, %v955
    %v969 = vpack.c.b16 %v958, %v957
    %v970 = vpack.c.b16 %v960, %v959
    %v971 = vpack.c.b16 %v962, %v961
    %v972 = vpack.c.b16 %v964, %v963
    %981 = vmatprep.subr.bf16.mxu0 0
    %982 = vmatpush1.bf16.msra.mxu0 %v965
    %983 = vmatprep.subr.bf16.mxu0 0
    %984 = vmatpush1.bf16.msra.mxu0 %v966
    %985 = vmatprep.subr.bf16.mxu0 0
    %986 = vmatpush1.bf16.msra.mxu0 %v967
    %987 = vmatprep.subr.bf16.mxu0 0
    %988 = vmatpush1.bf16.msra.mxu0 %v968
    %989 = vmatprep.subr.bf16.mxu0 0
    %990 = vmatpush1.bf16.msra.mxu0 %v969
    %991 = vmatprep.subr.bf16.mxu0 0
    %992 = vmatpush1.bf16.msra.mxu0 %v970
    %993 = vmatprep.subr.bf16.mxu0 0
    %994 = vmatpush1.bf16.msra.mxu0 %v971
    %995 = vmatprep.subr.bf16.mxu0 0
    %996 = vmatpush1.bf16.msra.mxu0 %v972
    %997 = vmatprep.subr.bf16.mxu0 0
    %998 = vmatpush1.bf16.msra.mxu0 0
    %999 = vmatprep.subr.bf16.mxu0 0
    %1000 = vmatpush1.bf16.msra.mxu0 0
    %1001 = vmatprep.subr.bf16.mxu0 0
    %1002 = vmatpush1.bf16.msra.mxu0 0
    %1003 = vmatprep.subr.bf16.mxu0 0
    %1004 = vmatpush1.bf16.msra.mxu0 0
    %1005 = vmatprep.subr.bf16.mxu0 0
    %1006 = vmatpush1.bf16.msra.mxu0 0
    %1007 = vmatprep.subr.bf16.mxu0 0
    %1008 = vmatpush1.bf16.msra.mxu0 0
    %1009 = vmatprep.subr.bf16.mxu0 0
    %1010 = vmatpush1.bf16.msra.mxu0 0
    %1011 = vmatprep.subr.bf16.mxu0 0
    %1012 = vmatpush1.bf16.msra.mxu0 0
    %1013 = vmatprep.mubr.f32.mxu0 0.0
    %1014 = vmatmul.mubr.f32.gmra.mrb[0].mxu0 %v903
    %v1015 = vpop.f32.mrb[0].mxu0
    %v1016 = vadd.f32 %v932, %v1015
    %v1017 = vpop.f32.mrb[0].mxu0
    %1018 = vmatprep.mubr.f32.mxu0 0.0
    %1019 = vmatmul.mubr.f32.gmra.mrb[0].mxu0 %v904
    %v1020 = vpop.f32.mrb[0].mxu0
    %v1021 = vadd.f32 %v932, %v1020
    %v1022 = vpop.f32.mrb[0].mxu0
    %1023 = vmatprep.mubr.f32.mxu0 0.0
    %1024 = vmatmul.mubr.f32.gmra.mrb[0].mxu0 %v905
    %v1025 = vpop.f32.mrb[0].mxu0
    %v1026 = vadd.f32 %v932, %v1025
    %v1027 = vpop.f32.mrb[0].mxu0
    %1028 = vmatprep.mubr.f32.mxu0 0.0
    %1029 = vmatmul.mubr.f32.gmra.mrb[0].mxu0 %v906
    %v1030 = vpop.f32.mrb[0].mxu0
    %v1031 = vadd.f32 %v932, %v1030
    %v1032 = vpop.f32.mrb[0].mxu0
    %1033 = vmatprep.mubr.f32.mxu0 0.0
    %1034 = vmatmul.mubr.f32.gmra.mrb[0].mxu0 %v907
    %v1035 = vpop.f32.mrb[0].mxu0
    %v1036 = vadd.f32 %v932, %v1035
    %v1037 = vpop.f32.mrb[0].mxu0
    %1038 = vmatprep.mubr.f32.mxu0 0.0
    %1039 = vmatmul.mubr.f32.gmra.mrb[0].mxu0 %v908
    %v1040 = vpop.f32.mrb[0].mxu0
    %v1041 = vadd.f32 %v932, %v1040
    %v1042 = vpop.f32.mrb[0].mxu0
    %1043 = vmatprep.mubr.f32.mxu0 0.0
    %1044 = vmatmul.mubr.f32.gmra.mrb[0].mxu0 %v909
    %v1045 = vpop.f32.mrb[0].mxu0
    %v1046 = vadd.f32 %v932, %v1045
    %v1047 = vpop.f32.mrb[0].mxu0
    %1048 = vmatprep.mubr.f32.mxu0 0.0
    %1049 = vmatmul.mubr.f32.gmra.mrb[0].mxu0 %v910
    %v1050 = vpop.f32.mrb[0].mxu0
    %v1051 = vadd.f32 %v932, %v1050
    %v1052 = vpop.f32.mrb[0].mxu0
    %1053 = vdwg.mxu0
    %v1054 = vld [vmem:[%s5] sm:$0xf]
    %v1055 = vld [vmem:[%s5 + $0x4] sm:$0xf]
    %v1056 = vld [vmem:[%s5 + $0x8] sm:$0xf]
    %v1057 = vld [vmem:[%s5 + $0xc] sm:$0xf]
    %v1058 = vld [vmem:[%s5 + $0x10] sm:$0xf]
    %v1059 = vld [vmem:[%s5 + $0x14] sm:$0xf]
    %v1060 = vld [vmem:[%s5 + $0x18] sm:$0xf]
    %v1061 = vld [vmem:[%s5 + $0x1c] sm:$0xf]
    %v1062 = vunpack.c.l.bf16 %v1054
    %v1063 = vunpack.c.l.bf16 %v1055
    %v1064 = vunpack.c.l.bf16 %v1056
    %v1065 = vunpack.c.l.bf16 %v1057
    %v1066 = vunpack.c.l.bf16 %v1058
    %v1067 = vunpack.c.l.bf16 %v1059
    %v1068 = vunpack.c.l.bf16 %v1060
    %v1069 = vunpack.c.l.bf16 %v1061
    %v1070 = vld [vmem:[#allocation2] sm:$0xff]
    %v1071 = vld [vmem:[#allocation2 + $0x8] sm:$0xff]
    %v1072 = vld [vmem:[#allocation2 + $0x10] sm:$0xff]
    %v1073 = vld [vmem:[#allocation2 + $0x18] sm:$0xff]
    %v1074 = vld [vmem:[#allocation2 + $0x20] sm:$0xff]
    %v1075 = vld [vmem:[#allocation2 + $0x28] sm:$0xff]
    %v1076 = vld [vmem:[#allocation2 + $0x30] sm:$0xff]
    %v1077 = vld [vmem:[#allocation2 + $0x38] sm:$0xff]
    %v1078 = vld [vmem:[#allocation2 + $0x40] sm:$0xff]
    %v1079 = vld [vmem:[#allocation2 + $0x48] sm:$0xff]
    %v1080 = vld [vmem:[#allocation2 + $0x50] sm:$0xff]
    %v1081 = vld [vmem:[#allocation2 + $0x58] sm:$0xff]
    %v1082 = vld [vmem:[#allocation2 + $0x60] sm:$0xff]
    %v1083 = vld [vmem:[#allocation2 + $0x68] sm:$0xff]
    %v1084 = vld [vmem:[#allocation2 + $0x70] sm:$0xff]
    %v1085 = vld [vmem:[#allocation2 + $0x78] sm:$0xff]
    %1086 = vmatprep.subr.mxu0 0.0
    %1087 = vmatpush1.msra.mxu0 %v1070
    %1088 = vmatprep.subr.mxu0 0.0
    %1089 = vmatpush1.msra.mxu0 %v1071
    %1090 = vmatprep.subr.mxu0 0.0
    %1091 = vmatpush1.msra.mxu0 %v1072
    %1092 = vmatprep.subr.mxu0 0.0
    %1093 = vmatpush1.msra.mxu0 %v1073
    %1094 = vmatprep.subr.mxu0 0.0
    %1095 = vmatpush1.msra.mxu0 %v1074
    %1096 = vmatprep.subr.mxu0 0.0
    %1097 = vmatpush1.msra.mxu0 %v1075
    %1098 = vmatprep.subr.mxu0 0.0
    %1099 = vmatpush1.msra.mxu0 %v1076
    %1100 = vmatprep.subr.mxu0 0.0
    %1101 = vmatpush1.msra.mxu0 %v1077
    %1102 = vmatprep.subr.mxu0 0.0
    %1103 = vmatpush1.msra.mxu0 %v1078
    %1104 = vmatprep.subr.mxu0 0.0
    %1105 = vmatpush1.msra.mxu0 %v1079
    %1106 = vmatprep.subr.mxu0 0.0
    %1107 = vmatpush1.msra.mxu0 %v1080
    %1108 = vmatprep.subr.mxu0 0.0
    %1109 = vmatpush1.msra.mxu0 %v1081
    %1110 = vmatprep.subr.mxu0 0.0
    %1111 = vmatpush1.msra.mxu0 %v1082
    %1112 = vmatprep.subr.mxu0 0.0
    %1113 = vmatpush1.msra.mxu0 %v1083
    %1114 = vmatprep.subr.mxu0 0.0
    %1115 = vmatpush1.msra.mxu0 %v1084
    %1116 = vmatprep.subr.mxu0 0.0
    %1117 = vmatpush1.msra.mxu0 %v1085
    %1118 = vmatprep.subr.mxu0 0.0
    %1119 = vmatpush1.msra.mxu0 0.0
    %1120 = vmatprep.subr.mxu0 0.0
    %1121 = vmatpush1.msra.mxu0 0.0
    %1122 = vmatprep.subr.mxu0 0.0
    %1123 = vmatpush1.msra.mxu0 0.0
    %1124 = vmatprep.subr.mxu0 0.0
    %1125 = vmatpush1.msra.mxu0 0.0
    %1126 = vmatprep.subr.mxu0 0.0
    %1127 = vmatpush1.msra.mxu0 0.0
    %1128 = vmatprep.subr.mxu0 0.0
    %1129 = vmatpush1.msra.mxu0 0.0
    %1130 = vmatprep.subr.mxu0 0.0
    %1131 = vmatpush1.msra.mxu0 0.0
    %1132 = vmatprep.subr.mxu0 0.0
    %1133 = vmatpush1.msra.mxu0 0.0
    %1134 = vmatprep.subr.mxu0 0.0
    %1135 = vmatpush1.msra.mxu0 0.0
    %1136 = vmatprep.subr.mxu0 0.0
    %1137 = vmatpush1.msra.mxu0 0.0
    %1138 = vmatprep.subr.mxu0 0.0
    %1139 = vmatpush1.msra.mxu0 0.0
    %1140 = vmatprep.subr.mxu0 0.0
    %1141 = vmatpush1.msra.mxu0 0.0
    %1142 = vmatprep.subr.mxu0 0.0
    %1143 = vmatpush1.msra.mxu0 0.0
    %1144 = vmatprep.subr.mxu0 0.0
    %1145 = vmatpush1.msra.mxu0 0.0
    %1146 = vmatprep.subr.mxu0 0.0
    %1147 = vmatpush1.msra.mxu0 0.0
    %1148 = vmatprep.subr.mxu0 0.0
    %1149 = vmatpush1.msra.mxu0 0.0
    %1150 = vmatprep.mubr.f32.mxu0 0.0
    %1151 = vmatmul.mubr.f32.gmra.mrb[0].mxu0 %v1062
    %v1152 = vpop.f32.mrb[0].mxu0
    %v1153 = vadd.f32 0.0, %v1152
    %v1154 = vpop.f32.mrb[0].mxu0
    %1155 = vmatprep.mubr.f32.mxu0 0.0
    %1156 = vmatmul.mubr.f32.gmra.mrb[0].mxu0 %v1063
    %v1157 = vpop.f32.mrb[0].mxu0
    %v1158 = vadd.f32 0.0, %v1157
    %v1159 = vpop.f32.mrb[0].mxu0
    %1160 = vmatprep.mubr.f32.mxu0 0.0
    %1161 = vmatmul.mubr.f32.gmra.mrb[0].mxu0 %v1064
    %v1162 = vpop.f32.mrb[0].mxu0
    %v1163 = vadd.f32 0.0, %v1162
    %v1164 = vpop.f32.mrb[0].mxu0
    %1165 = vmatprep.mubr.f32.mxu0 0.0
    %1166 = vmatmul.mubr.f32.gmra.mrb[0].mxu0 %v1065
    %v1167 = vpop.f32.mrb[0].mxu0
    %v1168 = vadd.f32 0.0, %v1167
    %v1169 = vpop.f32.mrb[0].mxu0
    %1170 = vmatprep.mubr.f32.mxu0 0.0
    %1171 = vmatmul.mubr.f32.gmra.mrb[0].mxu0 %v1066
    %v1172 = vpop.f32.mrb[0].mxu0
    %v1173 = vadd.f32 0.0, %v1172
    %v1174 = vpop.f32.mrb[0].mxu0
    %1175 = vmatprep.mubr.f32.mxu0 0.0
    %1176 = vmatmul.mubr.f32.gmra.mrb[0].mxu0 %v1067
    %v1177 = vpop.f32.mrb[0].mxu0
    %v1178 = vadd.f32 0.0, %v1177
    %v1179 = vpop.f32.mrb[0].mxu0
    %1180 = vmatprep.mubr.f32.mxu0 0.0
    %1181 = vmatmul.mubr.f32.gmra.mrb[0].mxu0 %v1068
    %v1182 = vpop.f32.mrb[0].mxu0
    %v1183 = vadd.f32 0.0, %v1182
    %v1184 = vpop.f32.mrb[0].mxu0
    %1185 = vmatprep.mubr.f32.mxu0 0.0
    %1186 = vmatmul.mubr.f32.gmra.mrb[0].mxu0 %v1069
    %v1187 = vpop.f32.mrb[0].mxu0
    %v1188 = vadd.f32 0.0, %v1187
    %v1189 = vpop.f32.mrb[0].mxu0
    %1190 = vdwg.mxu0
    %1191 = vadd.xlane.f32.xlu0 %v1062
    %v1192 = vpop.xlane.xlu0 %1191
    %1193 = vadd.xlane.f32.xlu0 %v1063
    %v1194 = vpop.xlane.xlu0 %1193
    %1195 = vadd.xlane.f32.xlu0 %v1064
    %v1196 = vpop.xlane.xlu0 %1195
    %1197 = vadd.xlane.f32.xlu0 %v1065
    %v1198 = vpop.xlane.xlu0 %1197
    %1199 = vadd.xlane.f32.xlu0 %v1066
    %v1200 = vpop.xlane.xlu0 %1199
    %1201 = vadd.xlane.f32.xlu0 %v1067
    %v1202 = vpop.xlane.xlu0 %1201
    %1203 = vadd.xlane.f32.xlu0 %v1068
    %v1204 = vpop.xlane.xlu0 %1203
    %1205 = vadd.xlane.f32.xlu0 %v1069
    %v1206 = vpop.xlane.xlu0 %1205
    %vm1207 = vcmp.gt.f32.partialorder %v1192, 0.5
    %vm1208 = vcmp.gt.f32.partialorder %v1194, 0.5
    %vm1209 = vcmp.gt.f32.partialorder %v1196, 0.5
    %vm1210 = vcmp.gt.f32.partialorder %v1198, 0.5
    %vm1211 = vcmp.gt.f32.partialorder %v1200, 0.5
    %vm1212 = vcmp.gt.f32.partialorder %v1202, 0.5
    %vm1213 = vcmp.gt.f32.partialorder %v1204, 0.5
    %vm1214 = vcmp.gt.f32.partialorder %v1206, 0.5
    %v1215 = vsel %vm1207, 1, 0
    %v1216 = vsel %vm1208, 1, 0
    %v1217 = vsel %vm1209, 1, 0
    %v1218 = vsel %vm1210, 1, 0
    %v1219 = vsel %vm1211, 1, 0
    %v1220 = vsel %vm1212, 1, 0
    %v1221 = vsel %vm1213, 1, 0
    %v1222 = vsel %vm1214, 1, 0
    %vm1223 = vcmp.eq.s32.totalorder %v1215, 1
    %vm1224 = vcmp.eq.s32.totalorder %v1216, 1
    %vm1225 = vcmp.eq.s32.totalorder %v1217, 1
    %vm1226 = vcmp.eq.s32.totalorder %v1218, 1
    %vm1227 = vcmp.eq.s32.totalorder %v1219, 1
    %vm1228 = vcmp.eq.s32.totalorder %v1220, 1
    %vm1229 = vcmp.eq.s32.totalorder %v1221, 1
    %vm1230 = vcmp.eq.s32.totalorder %v1222, 1
    %v1231 = vsel %vm1223, %v1153, %v1016
    %v1232 = vsel %vm1224, %v1158, %v1021
    %v1233 = vsel %vm1225, %v1163, %v1026
    %v1234 = vsel %vm1226, %v1168, %v1031
    %v1235 = vsel %vm1227, %v1173, %v1036
    %v1236 = vsel %vm1228, %v1178, %v1041
    %v1237 = vsel %vm1229, %v1183, %v1046
    %v1238 = vsel %vm1230, %v1188, %v1051
    %1239 = vst [vmem:[#allocation3] sm:$0xff] %v1231
    %1240 = vst [vmem:[#allocation3 + $0x8] sm:$0xff] %v1232
    %1241 = vst [vmem:[#allocation3 + $0x10] sm:$0xff] %v1233
    %1242 = vst [vmem:[#allocation3 + $0x18] sm:$0xff] %v1234
    %1243 = vst [vmem:[#allocation3 + $0x20] sm:$0xff] %v1235
    %1244 = vst [vmem:[#allocation3 + $0x28] sm:$0xff] %v1236
    %1245 = vst [vmem:[#allocation3 + $0x30] sm:$0xff] %v1237
    %1246 = vst [vmem:[#allocation3 + $0x38] sm:$0xff] %v1238
    // Predicated region
    $region74: #{triplet_embedding_copoly.1} parent=1 // pred_check
      _
    $region75: #{triplet_embedding_copoly.1} parent=1 // pred_check_branch
      %1248 = sbr.rel (0) target = $region77
    $region76: #{triplet_embedding_copoly.1} parent=1 // pred_region
      %s1250 = ssub.s32 1024, 1024
      %1251 = vsyncadd [#allocation4], %s1250
      %s1252 = sshll.u32 [#allocation3], 4
      %s1253 = int_to_ptr.vmem [resolvable:$true] %s1252
      %1258 = dma.vmem_to_hbm [thread:$0]  %s1253, 1024, %s18, [#allocation4], 128, 128, 8
    $region77: #{triplet_embedding_copoly.1} parent=1 // pred_fallthru
      _
    // Predicated region
    $region78: #{triplet_embedding_copoly.1} parent=1 // pred_check
      _
    $region79: #{triplet_embedding_copoly.1} parent=1 // pred_check_branch
      %1260 = sbr.rel (0) target = $region81
    $region80: #{triplet_embedding_copoly.1} parent=1 // pred_region
      %1261 = dma.done [#allocation4], 1024
    $region81: #{triplet_embedding_copoly.1} parent=1 // pred_fallthru
      _
    %1262 = vsyncpa [#allocation4], 1

</llo_original>
